<compile_context>
chip_gen: v7x
topology: tpu7x:2x2x1
jax: 0.10.0
libtpu: 0.0.40
codegen_flags: <defaults>
</compile_context>

<pallas_src>
import functools

import numpy as np
import jax
import jax.numpy as jnp
from jax.experimental import pallas as pl
from jax.experimental.pallas import tpu as pltpu


def _haar_filters():
    """Deterministic in-script replacement for pywt.Wavelet('haar').

    Reproduces the module's w_lll ... w_hhh construction: each buffer is the
    elementwise product of three length-L 1-D filters (dec_lo / dec_hi reversed),
    i.e. 8 length-L filters applied only along the W axis.
    """
    s = 1.0 / np.sqrt(2.0)
    dec_lo = np.array([s, s], dtype=np.float64)[::-1]    # pywt dec_lo reversed
    dec_hi = np.array([-s, s], dtype=np.float64)[::-1]   # pywt dec_hi reversed
    banks = []
    for fx in (dec_lo, dec_hi):          # order: lll, llh, lhl, lhh, hll, hlh, hhl, hhh
        for fy in (dec_lo, dec_hi):
            for fz in (dec_lo, dec_hi):
                banks.append(fx * fy * fz)
    return np.stack(banks, axis=0).astype(np.float32)    # (8, L)


@functools.lru_cache(maxsize=None)
def _conv_mats(filters_bytes, F, L, W):
    """Per-filter (2W, W_out) stride-2 conv matrices.

    Row index j < W addresses the even-H row of a folded (even,odd) H-row pair;
    rows j >= W (the odd-H row) are zero, so the even-H selection happens inside
    the matmul and the input DMA stays fully contiguous.
    """
    filters = np.frombuffer(filters_bytes, dtype=np.float32).reshape(F, L)
    W_out = (W - L) // 2 + 1
    M = np.zeros((F, 2 * W, W_out), dtype=np.float32)
    for f in range(F):
        for w in range(W_out):
            for k in range(L):
                M[f, 2 * w + k, w] = filters[f, k]
    return M


def _divisors_desc(n):
    return [d for d in range(n, 0, -1) if n % d == 0]


def _dwt3d_kernel(x_ref, m_ref, o_ref, *, TB, TD, H_out, W2, F, W_out):
    # x_ref : (TB, TD, H_out, W2)        even-D planes; each (even,odd) H row pair
    #                                    folded into one contiguous 2W-length vector
    # m_ref : (F, W2, W_out)             per-filter stride-2 conv matrices
    # o_ref : (TB, F, TD, H_out, W_out)  torch-layout output tile
    x2 = x_ref[...].reshape(TB * TD * H_out, W2)          # merge non-lane dims (cheap)
    for f in range(F):                                    # static unroll, F is small (8)
        y = jnp.dot(x2, m_ref[f], preferred_element_type=jnp.float32)
        o_ref[:, f, :, :, :] = y.reshape(TB, TD, H_out, W_out).astype(o_ref.dtype)


def dwt_3d(x, filters, *, vmem_budget_bytes=20 << 20):
    """Forward pass of DWT_3D.  x: (B, D, H, W) -> (B, 8*(D//2), H//2, W_out)."""
    B, D, H, W = x.shape
    F, L = filters.shape
    assert D % 2 == 0 and H % 2 == 0 and W >= L, "even D/H assumed (as in torch usage)"
    D_out, H_out, W2 = D // 2, H // 2, 2 * W
    W_out = (W - L) // 2 + 1

    filters_np = np.asarray(filters, dtype=np.float32)
    M = jnp.asarray(_conv_mats(filters_np.tobytes(), F, L, W), dtype=x.dtype)

    # ---- tile sizing (per (batch, D_out) unit) --------------------------------
    item = jnp.dtype(x.dtype).itemsize
    in_unit = item * H * W                                 # one even-D plane (odd-D never DMA'd)
    out_unit = item * F * H_out * W_out
    tmp_unit = 4 * H_out * W2 + 4 * F * H_out * W_out      # in-kernel x2 copy + f32 y results
    per_unit = 2 * in_unit + 2 * out_unit + tmp_unit       # double-buffered blocks + temporaries
    m_bytes = 2 * item * F * W2 * W_out                    # conv matrices (double-buffered)
    max_units = max(1, (vmem_budget_bytes - m_bytes) // per_unit)

    # A true (B*D_out) merge is not layout-compatible with writing the torch layout
    # directly (F sits between B and D_out), so tile B and D_out jointly as TB x TD:
    # D_out is tiled first; if a whole batch element fits, grow the tile across B.
    d_divs, b_divs = _divisors_desc(D_out), _divisors_desc(B)
    TD = D_out if max_units >= D_out else next(d for d in d_divs if d <= max_units)
    TB = (next(d for d in b_divs if d <= max(1, max_units // D_out))
          if TD == D_out else 1)

    # Keep >= 4 balanced parallel steps (when that much work exists) so both v7x
    # TensorCores get fed; harmless on single-TC v5e/v6e.
    target_steps = min(4, B * D_out)

    def steps(tb, td):
        return (B // tb) * (D_out // td)

    while steps(TB, TD) < target_steps:
        if TB > 1:
            TB = next(d for d in b_divs if d < TB)
        elif TD > 1:
            TD = next(d for d in d_divs if d < TD)
        else:
            break

    accounted = m_bytes + per_unit * TB * TD
    compiler_kwargs = dict(dimension_semantics=("parallel", "parallel"))
    if accounted > (12 << 20):          # above the smallest default scoped-VMEM budget (v5e)
        compiler_kwargs["vmem_limit_bytes"] = 32 << 20   # <= physical VMEM on all generations

    # ---- free (contiguous, metadata-only) reshape of the input ----------------
    # D parity gets its own BlockSpec-selected axis; (even,odd) H row pairs are folded
    # into a single 2W vector. No dtype cast, no data movement.
    x6 = x.reshape(B, D_out, 2, H_out, W2)

    kernel = functools.partial(_dwt3d_kernel, TB=TB, TD=TD, H_out=H_out,
                               W2=W2, F=F, W_out=W_out)

    out5 = pl.pallas_call(
        kernel,
        out_shape=jax.ShapeDtypeStruct((B, F, D_out, H_out, W_out), x.dtype),
        grid_spec=pltpu.PrefetchScalarGridSpec(
            num_scalar_prefetch=0,
            grid=(B // TB, D_out // TD),
            in_specs=[
                pl.BlockSpec((TB, TD, None, H_out, W2),
                             lambda b, d: (b, d, 0, 0, 0)),       # parity 0 = even-D only
                pl.BlockSpec((F, W2, W_out), lambda b, d: (0, 0, 0)),
            ],
            out_specs=pl.BlockSpec((TB, F, TD, H_out, W_out),
                                   lambda b, d: (b, 0, d, 0, 0)),
        ),
        compiler_params=pltpu.CompilerParams(**compiler_kwargs),
    )(x6, M)

    # (B, F, D_out, H_out, W_out) -> (B, F*D_out, H_out, W_out): adjacent-axis merge on a
    # contiguous array -> pure metadata reshape, no extra HBM pass. Matches torch.cat(dim=1).
    return out5.reshape(B, F * D_out, H_out, W_out)


if __name__ == "__main__":
    key = jax.random.PRNGKey(0)
    B, D, H, W = 2, 16, 16, 16
    x = jax.random.normal(key, (B, D, H, W), dtype=jnp.float32)

    filters_np = _haar_filters()                          # (8, 2) deterministic haar bank
    dwt = jax.jit(lambda v: dwt_3d(v, filters_np))

    out = jax.block_until_ready(dwt(x))

    # Plain-JAX reference of the exact torch semantics for a correctness check.
    F_, L = filters_np.shape
    W_out = (W - L) // 2 + 1
    xs = x[:, ::2, ::2, :]                                # stride-2 subsample in D, H
    ref_banks = []
    for f in range(F_):
        acc = jnp.zeros((B, D // 2, H // 2, W_out), jnp.float32)
        for k in range(L):
            acc = acc + filters_np[f, k] * xs[..., k:k + 2 * W_out:2]
        ref_banks.append(acc)
    ref = jnp.stack(ref_banks, axis=1).reshape(B, F_ * (D // 2), H // 2, W_out)

    assert out.shape == (B, F_ * (D // 2), H // 2, W_out), out.shape
    np.testing.assert_allclose(np.asarray(out), np.asarray(ref), rtol=1e-5, atol=1e-5)
    print("KERNEL_OK")
</pallas_src>

<mosaic_0001>
module attributes {stable_mosaic.version = 11 : i64} {
  func.func @_dwt3d_kernel(%arg0: i32, %arg1: i32, %arg2: memref<1x4x1x8x32xf32, #tpu.memory_space<vmem>>, %arg3: memref<8x32x8xf32, #tpu.memory_space<vmem>>, %arg4: memref<1x8x4x8x8xf32, #tpu.memory_space<vmem>>) attributes {dimension_semantics = [#tpu.dimension_semantics<parallel>, #tpu.dimension_semantics<parallel>], iteration_bounds = array<i64: 2, 2>, scalar_prefetch = 0 : i64, scratch_operands = 0 : i64, tpu.core_type = #tpu.core_type<tc>, window_params = [{transform_indices = @transform_0, window_bounds = array<i64: 1, 4, 1, 8, 32>}, {pipeline_mode = #tpu.pipeline_mode<synchronous>, transform_indices = @transform_1, window_bounds = array<i64: 8, 32, 8>}, {transform_indices = @transform_2, window_bounds = array<i64: 1, 8, 4, 8, 8>}]} {
    %c0 = arith.constant 0 : index
    %c0_0 = arith.constant 0 : index
    %c0_1 = arith.constant 0 : index
    %c0_2 = arith.constant 0 : index
    %c0_3 = arith.constant 0 : index
    %0 = vector.load %arg2[%c0, %c0_0, %c0_1, %c0_2, %c0_3] : memref<1x4x1x8x32xf32, #tpu.memory_space<vmem>>, vector<1x4x1x8x32xf32>
    %1 = vector.shape_cast %0 : vector<1x4x1x8x32xf32> to vector<1x4x8x32xf32>
    %2 = vector.shape_cast %1 : vector<1x4x8x32xf32> to vector<32x32xf32>
    %c0_4 = arith.constant 0 : index
    %c0_5 = arith.constant 0 : index
    %c0_6 = arith.constant 0 : index
    %3 = vector.load %arg3[%c0_4, %c0_5, %c0_6] : memref<8x32x8xf32, #tpu.memory_space<vmem>>, vector<1x32x8xf32>
    %4 = vector.shape_cast %3 : vector<1x32x8xf32> to vector<32x8xf32>
    %cst = arith.constant dense<0.000000e+00> : vector<32x8xf32>
    %5 = tpu.matmul %2, %4, %cst {dimension_numbers = #tpu.dot_dimension_numbers<[1], [0], [0], [1], [0, 0, 1, 1], [], []>} : vector<32x32xf32>, vector<32x8xf32>, vector<32x8xf32> -> vector<32x8xf32>
    %6 = vector.shape_cast %5 : vector<32x8xf32> to vector<1x4x8x8xf32>
    %c0_7 = arith.constant 0 : index
    %c0_8 = arith.constant 0 : index
    %c0_9 = arith.constant 0 : index
    %c0_10 = arith.constant 0 : index
    %c0_11 = arith.constant 0 : index
    %7 = vector.load %arg4[%c0_7, %c0_8, %c0_9, %c0_10, %c0_11] : memref<1x8x4x8x8xf32, #tpu.memory_space<vmem>>, vector<1x1x4x8x8xf32>
    %8 = vector.shape_cast %7 : vector<1x1x4x8x8xf32> to vector<1x4x8x8xf32>
    %9 = vector.shape_cast %6 : vector<1x4x8x8xf32> to vector<1x1x4x8x8xf32>
    tpu.vector_store %arg4[%c0_7, %c0_8, %c0_9, %c0_10, %c0_11], %9 {strides = array<i32>} : memref<1x8x4x8x8xf32, #tpu.memory_space<vmem>>, vector<1x1x4x8x8xf32>,
    %c1 = arith.constant 1 : index
    %c0_12 = arith.constant 0 : index
    %c0_13 = arith.constant 0 : index
    %10 = vector.load %arg3[%c1, %c0_12, %c0_13] : memref<8x32x8xf32, #tpu.memory_space<vmem>>, vector<1x32x8xf32>
    %11 = vector.shape_cast %10 : vector<1x32x8xf32> to vector<32x8xf32>
    %cst_14 = arith.constant dense<0.000000e+00> : vector<32x8xf32>
    %12 = tpu.matmul %2, %11, %cst_14 {dimension_numbers = #tpu.dot_dimension_numbers<[1], [0], [0], [1], [0, 0, 1, 1], [], []>} : vector<32x32xf32>, vector<32x8xf32>, vector<32x8xf32> -> vector<32x8xf32>
    %13 = vector.shape_cast %12 : vector<32x8xf32> to vector<1x4x8x8xf32>
    %c0_15 = arith.constant 0 : index
    %c1_16 = arith.constant 1 : index
    %c0_17 = arith.constant 0 : index
    %c0_18 = arith.constant 0 : index
    %c0_19 = arith.constant 0 : index
    %14 = vector.load %arg4[%c0_15, %c1_16, %c0_17, %c0_18, %c0_19] : memref<1x8x4x8x8xf32, #tpu.memory_space<vmem>>, vector<1x1x4x8x8xf32>
    %15 = vector.shape_cast %14 : vector<1x1x4x8x8xf32> to vector<1x4x8x8xf32>
    %16 = vector.shape_cast %13 : vector<1x4x8x8xf32> to vector<1x1x4x8x8xf32>
    tpu.vector_store %arg4[%c0_15, %c1_16, %c0_17, %c0_18, %c0_19], %16 {strides = array<i32>} : memref<1x8x4x8x8xf32, #tpu.memory_space<vmem>>, vector<1x1x4x8x8xf32>,
    %c2 = arith.constant 2 : index
    %c0_20 = arith.constant 0 : index
    %c0_21 = arith.constant 0 : index
    %17 = vector.load %arg3[%c2, %c0_20, %c0_21] : memref<8x32x8xf32, #tpu.memory_space<vmem>>, vector<1x32x8xf32>
    %18 = vector.shape_cast %17 : vector<1x32x8xf32> to vector<32x8xf32>
    %cst_22 = arith.constant dense<0.000000e+00> : vector<32x8xf32>
    %19 = tpu.matmul %2, %18, %cst_22 {dimension_numbers = #tpu.dot_dimension_numbers<[1], [0], [0], [1], [0, 0, 1, 1], [], []>} : vector<32x32xf32>, vector<32x8xf32>, vector<32x8xf32> -> vector<32x8xf32>
    %20 = vector.shape_cast %19 : vector<32x8xf32> to vector<1x4x8x8xf32>
    %c0_23 = arith.constant 0 : index
    %c2_24 = arith.constant 2 : index
    %c0_25 = arith.constant 0 : index
    %c0_26 = arith.constant 0 : index
    %c0_27 = arith.constant 0 : index
    %21 = vector.load %arg4[%c0_23, %c2_24, %c0_25, %c0_26, %c0_27] : memref<1x8x4x8x8xf32, #tpu.memory_space<vmem>>, vector<1x1x4x8x8xf32>
    %22 = vector.shape_cast %21 : vector<1x1x4x8x8xf32> to vector<1x4x8x8xf32>
    %23 = vector.shape_cast %20 : vector<1x4x8x8xf32> to vector<1x1x4x8x8xf32>
    tpu.vector_store %arg4[%c0_23, %c2_24, %c0_25, %c0_26, %c0_27], %23 {strides = array<i32>} : memref<1x8x4x8x8xf32, #tpu.memory_space<vmem>>, vector<1x1x4x8x8xf32>,
    %c3 = arith.constant 3 : index
    %c0_28 = arith.constant 0 : index
    %c0_29 = arith.constant 0 : index
    %24 = vector.load %arg3[%c3, %c0_28, %c0_29] : memref<8x32x8xf32, #tpu.memory_space<vmem>>, vector<1x32x8xf32>
    %25 = vector.shape_cast %24 : vector<1x32x8xf32> to vector<32x8xf32>
    %cst_30 = arith.constant dense<0.000000e+00> : vector<32x8xf32>
    %26 = tpu.matmul %2, %25, %cst_30 {dimension_numbers = #tpu.dot_dimension_numbers<[1], [0], [0], [1], [0, 0, 1, 1], [], []>} : vector<32x32xf32>, vector<32x8xf32>, vector<32x8xf32> -> vector<32x8xf32>
    %27 = vector.shape_cast %26 : vector<32x8xf32> to vector<1x4x8x8xf32>
    %c0_31 = arith.constant 0 : index
    %c3_32 = arith.constant 3 : index
    %c0_33 = arith.constant 0 : index
    %c0_34 = arith.constant 0 : index
    %c0_35 = arith.constant 0 : index
    %28 = vector.load %arg4[%c0_31, %c3_32, %c0_33, %c0_34, %c0_35] : memref<1x8x4x8x8xf32, #tpu.memory_space<vmem>>, vector<1x1x4x8x8xf32>
    %29 = vector.shape_cast %28 : vector<1x1x4x8x8xf32> to vector<1x4x8x8xf32>
    %30 = vector.shape_cast %27 : vector<1x4x8x8xf32> to vector<1x1x4x8x8xf32>
    tpu.vector_store %arg4[%c0_31, %c3_32, %c0_33, %c0_34, %c0_35], %30 {strides = array<i32>} : memref<1x8x4x8x8xf32, #tpu.memory_space<vmem>>, vector<1x1x4x8x8xf32>,
    %c4 = arith.constant 4 : index
    %c0_36 = arith.constant 0 : index
    %c0_37 = arith.constant 0 : index
    %31 = vector.load %arg3[%c4, %c0_36, %c0_37] : memref<8x32x8xf32, #tpu.memory_space<vmem>>, vector<1x32x8xf32>
    %32 = vector.shape_cast %31 : vector<1x32x8xf32> to vector<32x8xf32>
    %cst_38 = arith.constant dense<0.000000e+00> : vector<32x8xf32>
    %33 = tpu.matmul %2, %32, %cst_38 {dimension_numbers = #tpu.dot_dimension_numbers<[1], [0], [0], [1], [0, 0, 1, 1], [], []>} : vector<32x32xf32>, vector<32x8xf32>, vector<32x8xf32> -> vector<32x8xf32>
    %34 = vector.shape_cast %33 : vector<32x8xf32> to vector<1x4x8x8xf32>
    %c0_39 = arith.constant 0 : index
    %c4_40 = arith.constant 4 : index
    %c0_41 = arith.constant 0 : index
    %c0_42 = arith.constant 0 : index
    %c0_43 = arith.constant 0 : index
    %35 = vector.load %arg4[%c0_39, %c4_40, %c0_41, %c0_42, %c0_43] : memref<1x8x4x8x8xf32, #tpu.memory_space<vmem>>, vector<1x1x4x8x8xf32>
    %36 = vector.shape_cast %35 : vector<1x1x4x8x8xf32> to vector<1x4x8x8xf32>
    %37 = vector.shape_cast %34 : vector<1x4x8x8xf32> to vector<1x1x4x8x8xf32>
    tpu.vector_store %arg4[%c0_39, %c4_40, %c0_41, %c0_42, %c0_43], %37 {strides = array<i32>} : memref<1x8x4x8x8xf32, #tpu.memory_space<vmem>>, vector<1x1x4x8x8xf32>,
    %c5 = arith.constant 5 : index
    %c0_44 = arith.constant 0 : index
    %c0_45 = arith.constant 0 : index
    %38 = vector.load %arg3[%c5, %c0_44, %c0_45] : memref<8x32x8xf32, #tpu.memory_space<vmem>>, vector<1x32x8xf32>
    %39 = vector.shape_cast %38 : vector<1x32x8xf32> to vector<32x8xf32>
    %cst_46 = arith.constant dense<0.000000e+00> : vector<32x8xf32>
    %40 = tpu.matmul %2, %39, %cst_46 {dimension_numbers = #tpu.dot_dimension_numbers<[1], [0], [0], [1], [0, 0, 1, 1], [], []>} : vector<32x32xf32>, vector<32x8xf32>, vector<32x8xf32> -> vector<32x8xf32>
    %41 = vector.shape_cast %40 : vector<32x8xf32> to vector<1x4x8x8xf32>
    %c0_47 = arith.constant 0 : index
    %c5_48 = arith.constant 5 : index
    %c0_49 = arith.constant 0 : index
    %c0_50 = arith.constant 0 : index
    %c0_51 = arith.constant 0 : index
    %42 = vector.load %arg4[%c0_47, %c5_48, %c0_49, %c0_50, %c0_51] : memref<1x8x4x8x8xf32, #tpu.memory_space<vmem>>, vector<1x1x4x8x8xf32>
    %43 = vector.shape_cast %42 : vector<1x1x4x8x8xf32> to vector<1x4x8x8xf32>
    %44 = vector.shape_cast %41 : vector<1x4x8x8xf32> to vector<1x1x4x8x8xf32>
    tpu.vector_store %arg4[%c0_47, %c5_48, %c0_49, %c0_50, %c0_51], %44 {strides = array<i32>} : memref<1x8x4x8x8xf32, #tpu.memory_space<vmem>>, vector<1x1x4x8x8xf32>,
    %c6 = arith.constant 6 : index
    %c0_52 = arith.constant 0 : index
    %c0_53 = arith.constant 0 : index
    %45 = vector.load %arg3[%c6, %c0_52, %c0_53] : memref<8x32x8xf32, #tpu.memory_space<vmem>>, vector<1x32x8xf32>
    %46 = vector.shape_cast %45 : vector<1x32x8xf32> to vector<32x8xf32>
    %cst_54 = arith.constant dense<0.000000e+00> : vector<32x8xf32>
    %47 = tpu.matmul %2, %46, %cst_54 {dimension_numbers = #tpu.dot_dimension_numbers<[1], [0], [0], [1], [0, 0, 1, 1], [], []>} : vector<32x32xf32>, vector<32x8xf32>, vector<32x8xf32> -> vector<32x8xf32>
    %48 = vector.shape_cast %47 : vector<32x8xf32> to vector<1x4x8x8xf32>
    %c0_55 = arith.constant 0 : index
    %c6_56 = arith.constant 6 : index
    %c0_57 = arith.constant 0 : index
    %c0_58 = arith.constant 0 : index
    %c0_59 = arith.constant 0 : index
    %49 = vector.load %arg4[%c0_55, %c6_56, %c0_57, %c0_58, %c0_59] : memref<1x8x4x8x8xf32, #tpu.memory_space<vmem>>, vector<1x1x4x8x8xf32>
    %50 = vector.shape_cast %49 : vector<1x1x4x8x8xf32> to vector<1x4x8x8xf32>
    %51 = vector.shape_cast %48 : vector<1x4x8x8xf32> to vector<1x1x4x8x8xf32>
    tpu.vector_store %arg4[%c0_55, %c6_56, %c0_57, %c0_58, %c0_59], %51 {strides = array<i32>} : memref<1x8x4x8x8xf32, #tpu.memory_space<vmem>>, vector<1x1x4x8x8xf32>,
    %c7 = arith.constant 7 : index
    %c0_60 = arith.constant 0 : index
    %c0_61 = arith.constant 0 : index
    %52 = vector.load %arg3[%c7, %c0_60, %c0_61] : memref<8x32x8xf32, #tpu.memory_space<vmem>>, vector<1x32x8xf32>
    %53 = vector.shape_cast %52 : vector<1x32x8xf32> to vector<32x8xf32>
    %cst_62 = arith.constant dense<0.000000e+00> : vector<32x8xf32>
    %54 = tpu.matmul %2, %53, %cst_62 {dimension_numbers = #tpu.dot_dimension_numbers<[1], [0], [0], [1], [0, 0, 1, 1], [], []>} : vector<32x32xf32>, vector<32x8xf32>, vector<32x8xf32> -> vector<32x8xf32>
    %55 = vector.shape_cast %54 : vector<32x8xf32> to vector<1x4x8x8xf32>
    %c0_63 = arith.constant 0 : index
    %c7_64 = arith.constant 7 : index
    %c0_65 = arith.constant 0 : index
    %c0_66 = arith.constant 0 : index
    %c0_67 = arith.constant 0 : index
    %56 = vector.load %arg4[%c0_63, %c7_64, %c0_65, %c0_66, %c0_67] : memref<1x8x4x8x8xf32, #tpu.memory_space<vmem>>, vector<1x1x4x8x8xf32>
    %57 = vector.shape_cast %56 : vector<1x1x4x8x8xf32> to vector<1x4x8x8xf32>
    %58 = vector.shape_cast %55 : vector<1x4x8x8xf32> to vector<1x1x4x8x8xf32>
    tpu.vector_store %arg4[%c0_63, %c7_64, %c0_65, %c0_66, %c0_67], %58 {strides = array<i32>} : memref<1x8x4x8x8xf32, #tpu.memory_space<vmem>>, vector<1x1x4x8x8xf32>,
    return
  }
  func.func @transform_0(%arg0: i32, %arg1: i32) -> (i32, i32, i32, i32, i32) {
    %c0_i32 = arith.constant 0 : i32
    %c0_i32_0 = arith.constant 0 : i32
    %c0_i32_1 = arith.constant 0 : i32
    %c0_i32_2 = arith.constant 0 : i32
    return %arg0, %arg1, %c0_i32, %c0_i32_0, %c0_i32_1 : i32, i32, i32, i32, i32
  }
  func.func @transform_1(%arg0: i32, %arg1: i32) -> (i32, i32, i32) {
    %c0_i32 = arith.constant 0 : i32
    %c0_i32_0 = arith.constant 0 : i32
    %c0_i32_1 = arith.constant 0 : i32
    %c0_i32_2 = arith.constant 0 : i32
    return %c0_i32, %c0_i32_0, %c0_i32_1 : i32, i32, i32
  }
  func.func @transform_2(%arg0: i32, %arg1: i32) -> (i32, i32, i32, i32, i32) {
    %c0_i32 = arith.constant 0 : i32
    %c0_i32_0 = arith.constant 0 : i32
    %c0_i32_1 = arith.constant 0 : i32
    %c0_i32_2 = arith.constant 0 : i32
    return %arg0, %c0_i32, %arg1, %c0_i32_0, %c0_i32_1 : i32, i32, i32, i32, i32
  }
}

</mosaic_0001>

<llo_original>
// kernel: _lambda_.1
$region0: #{_lambda_.1}
  #allocation0 [shape = 'u32[]', space=smem, size = 0x4, offset = 0x4, fixed_abs, tag = 'smem constant byte address 0x4 - core index']
  #allocation1 [shape = 'u32[144,128]{1,0:T(1,128)}', space=vmem, size = 0x12000, scoped, tag = 'internal scratch']
  %s0 = inlined_call_operand.vmem [shape: f32[2,8,2,8,32], index: 0, kind: input, shape index: {}]
  %s1 = inlined_call_operand.vmem [shape: f32[8,32,8], index: 1, kind: input, shape index: {}]
  %s2 = inlined_call_operand.vmem [shape: f32[2,8,8,8,8], index: 2, kind: output, shape index: {}]
  %s3 = sld [smem:[#allocation0]]
  $region113: #{_lambda_.1} parent=0
    _
  %s5 = ssub.s32 1, %s3
  %s6 = scalar_select 0, %s5, %s3
  $region1: #{_lambda_.1} parent=0
    #allocation2 [shape = 'u8[32768]{0}', space=vmem, size = 0x8000, scoped, tag = 'input window, operand 0']
    #allocation3 [shape = 'u8[262144]{0}', space=vmem, size = 0x40000, scoped, tag = 'output window, operand 0']
    loop: start=0, step=1, limit=6
    $region2: #{_lambda_.1} parent=1 // loop_pre_header
      _
    $region3: #{_lambda_.1} parent=1 // loop_header
      %s8 = sphi 0, %s12
      %p9 = scmp.ge.s32.totalorder %s8, 6
      %s15 = sphi 0, %s27
      %s16 = sphi 0, %s23
      %s17 = sphi 0, %s15
      %s18 = sphi 0, %s16
      %s19 = sphi 0, %s17
      %s20 = sphi 0, %s18
      %s32 = sphi 0, %s34
      %s35 = sphi 0, %s32
      %s36 = sphi 0, %s35
      %s52 = sphi 0, %s36
      %s56 = sphi 0, %s56
      %s58 = sphi 0, %s56
      %s59 = sphi 0, %s58
      %s73 = sphi 0, %s59
      %s81 = sphi 0, %s83
      %s84 = sphi 0, %s81
      %s85 = sphi 0, %s84
      %s101 = sphi 0, %s85
    $region4: #{_lambda_.1} parent=1 // loop_header_branch
      %11 = sbr.rel (%p9) target = $region8
    $region5: #{_lambda_.1} parent=1 // loop_body
      %s13 = ssub.s32 %s8, 1
      %s14 = ssub.s32 %s8, 2
      %s21 = sadd.s32 1, %s16
      %p22 = scmp.ge.s32.totalorder %s21, 2
      %s23 = scalar_select %p22, 0, %s21
      %s24 = sadd.s32 1, %s15
      %s25 = scalar_select %p22, %s24, %s15
      %p26 = scmp.ge.s32.totalorder %s25, 2
      %s27 = scalar_select %p26, 0, %s25
      %s28 = ssub.s32 %s15, %s27
      %s29 = ssub.s32 %s16, %s23
      %s30 = sor.u32 %s28, %s29
      %p31 = scmp.eq.s32.totalorder %s30, 0
      %s33 = sadd.s32 %s32, 1
      %s34 = scalar_select %p31, %s32, %s33
      %p37 = pneg %p31
      %p38 = scmp.eq.s32.totalorder %s8, 3
      %p39 = por %p37, %p38
      %p40 = scmp.ne.s32.totalorder %s32, %s35
      %p41 = scmp.eq.s32.totalorder %s8, 0
      %p42 = por %p40, %p41
      %p43 = scmp.ne.s32.totalorder %s32, %s35
      %p44 = scmp.eq.s32.totalorder %s13, 3
      %p45 = por %p43, %p44
      %p46 = scmp.ne.s32.totalorder %s35, %s36
      %p47 = scmp.eq.s32.totalorder %s13, 0
      %p48 = por %p46, %p47
      %p49 = scmp.ne.s32.totalorder %s35, %s36
      %p50 = scmp.eq.s32.totalorder %s14, 3
      %p51 = por %p49, %p50
      %p53 = scmp.ne.s32.totalorder %s36, %s52
      %p54 = scmp.eq.s32.totalorder %s14, 0
      %p55 = por %p53, %p54
      %s57 = sadd.s32 %s56, 1
      %p60 = scmp.eq.s32.totalorder %s8, 3
      %p61 = scmp.ne.s32.totalorder %s56, %s58
      %p62 = scmp.eq.s32.totalorder %s8, 0
      %p63 = por %p61, %p62
      %p64 = scmp.ne.s32.totalorder %s56, %s58
      %p65 = scmp.eq.s32.totalorder %s13, 3
      %p66 = por %p64, %p65
      %p67 = scmp.ne.s32.totalorder %s58, %s59
      %p68 = scmp.eq.s32.totalorder %s13, 0
      %p69 = por %p67, %p68
      %p70 = scmp.ne.s32.totalorder %s58, %s59
      %p71 = scmp.eq.s32.totalorder %s14, 3
      %p72 = por %p70, %p71
      %p74 = scmp.ne.s32.totalorder %s59, %s73
      %p75 = scmp.eq.s32.totalorder %s14, 0
      %p76 = por %p74, %p75
      %s77 = ssub.s32 %s15, %s27
      %s78 = ssub.s32 %s16, %s23
      %s79 = sor.u32 %s77, %s78
      %p80 = scmp.eq.s32.totalorder %s79, 0
      %s82 = sadd.s32 %s81, 1
      %s83 = scalar_select %p80, %s81, %s82
      %p86 = pneg %p80
      %p87 = scmp.eq.s32.totalorder %s8, 3
      %p88 = por %p86, %p87
      %p89 = scmp.ne.s32.totalorder %s81, %s84
      %p90 = scmp.eq.s32.totalorder %s8, 0
      %p91 = por %p89, %p90
      %p92 = scmp.ne.s32.totalorder %s81, %s84
      %p93 = scmp.eq.s32.totalorder %s13, 3
      %p94 = por %p92, %p93
      %p95 = scmp.ne.s32.totalorder %s84, %s85
      %p96 = scmp.eq.s32.totalorder %s13, 0
      %p97 = por %p95, %p96
      %p98 = scmp.ne.s32.totalorder %s84, %s85
      %p99 = scmp.eq.s32.totalorder %s14, 3
      %p100 = por %p98, %p99
      %p102 = scmp.ne.s32.totalorder %s85, %s101
      %p103 = scmp.eq.s32.totalorder %s14, 0
      %p104 = por %p102, %p103
      %p105 = scmp.le.s32.totalorder 1, %s8
      %p106 = scmp.lt.s32.totalorder %s8, 5
      %p107 = pnand %p105, %p106
      %p108 = pneg %p107
      // Predicated region
      $region9: #{_lambda_.1} parent=5 // pred_check
        _
      $region10: #{_lambda_.1} parent=5 // pred_check_branch
        %110 = sbr.rel (%p107) target = $region12
      $region11: #{_lambda_.1} parent=5 // pred_region
        %s111 = ssub.s32 %s8, 1
        // Predicated region
        $region13: #{_lambda_.1} parent=11 // pred_check
          %p112 = pneg %p69
        $region14: #{_lambda_.1} parent=11 // pred_check_branch
          %114 = sbr.rel (%p112) target = $region16
        $region15: #{_lambda_.1} parent=11 // pred_region
          _
        $region16: #{_lambda_.1} parent=11 // pred_fallthru
          _
      $region12: #{_lambda_.1} parent=5 // pred_fallthru
        _
      %p115 = scmp.lt.s32.totalorder %s8, 4
      // Predicated region
      $region17: #{_lambda_.1} parent=5 // pred_check
        %p116 = pneg %p115
      $region18: #{_lambda_.1} parent=5 // pred_check_branch
        %118 = sbr.rel (%p116) target = $region20
      $region19: #{_lambda_.1} parent=5 // pred_region
        // Predicated region
        $region21: #{_lambda_.1} parent=19 // pred_check
          %p119 = pneg %p42
        $region22: #{_lambda_.1} parent=19 // pred_check_branch
          %121 = sbr.rel (%p119) target = $region24
        $region23: #{_lambda_.1} parent=19 // pred_region
          %s122 = sand.u32 %s32, 1
          %s123 = sand.u32 %s32, 1
          %s124 = smul.addr %s123, 32
          %s125 = scalar_lea.vmem [#allocation2], %s124
          %s126 = smul.u32 4, %s16
          %s127 = smul.addr %s126, 2
          %s128 = smul.addr %s15, 16
          %s129 = sadd.s32 %s127, %s128
          %s130 = smul.addr %s129, 8
          %s131 = scalar_lea.vmem %s0, %s130
          // Predicated region
          $region25: #{_lambda_.1} parent=23 // pred_check
            _
          $region26: #{_lambda_.1} parent=23 // pred_check_branch
            %133 = sbr.rel (0) target = $region28
          $region27: #{_lambda_.1} parent=23 // pred_region
            // Predicated region
            $region29: #{_lambda_.1} parent=27 // pred_check
              _
            $region30: #{_lambda_.1} parent=27 // pred_check_branch
              %135 = sbr.rel (0) target = $region32
            $region31: #{_lambda_.1} parent=27 // pred_region
              // Predicated region
              $region44: #{_lambda_.1} parent=31 // pred_check
                _
              $region45: #{_lambda_.1} parent=31 // pred_check_branch
                %156 = sbr.rel (0) target = $region47
              $region46: #{_lambda_.1} parent=31 // pred_region
                loop: start=0, step=1, limit=1
                $region48: #{_lambda_.1} parent=46 // loop_pre_header
                  _
                $region49: #{_lambda_.1} parent=46 // loop_header
                  %s158 = sphi 0, %s162
                  %p159 = scmp.ge.s32.totalorder %s158, 1
                  %s163 = sphi %s131, %s131
                  %s164 = sphi %s125, %s125
                $region50: #{_lambda_.1} parent=46 // loop_header_branch
                  %161 = sbr.rel (%p159) target = $region54
                $region51: #{_lambda_.1} parent=46 // loop_body
                  %v165 = vld [vmem:[%s163] sm:$0xff]
                  %166 = vst [vmem:[%s164] sm:$0xff] %v165
                  %v167 = vld [vmem:[%s163 + $0x10] sm:$0xff]
                  %168 = vst [vmem:[%s164 + $0x8] sm:$0xff] %v167
                  %v169 = vld [vmem:[%s163 + $0x20] sm:$0xff]
                  %170 = vst [vmem:[%s164 + $0x10] sm:$0xff] %v169
                  %v171 = vld [vmem:[%s163 + $0x30] sm:$0xff]
                  %172 = vst [vmem:[%s164 + $0x18] sm:$0xff] %v171
                $region52: #{_lambda_.1} parent=46 // loop_footer
                  %s162 = sadd.s32 1, %s158
                $region53: #{_lambda_.1} parent=46 // loop_footer_branch
                  %157 = sbr.rel target = $region49
                $region54: #{_lambda_.1} parent=46 // loop_exit
                  _
              $region47: #{_lambda_.1} parent=31 // pred_fallthru
                _
              // Predicated region
              $region55: #{_lambda_.1} parent=31 // pred_check
                _
              $region56: #{_lambda_.1} parent=31 // pred_check_branch
                %174 = sbr.rel target = $region58
              $region57: #{_lambda_.1} parent=31 // pred_region
                _
              $region58: #{_lambda_.1} parent=31 // pred_fallthru
                _
            $region32: #{_lambda_.1} parent=27 // pred_fallthru
              _
            // Predicated region
            $region33: #{_lambda_.1} parent=27 // pred_check
              _
            $region34: #{_lambda_.1} parent=27 // pred_check_branch
              %137 = sbr.rel target = $region36
            $region35: #{_lambda_.1} parent=27 // pred_region
              loop: start=0, step=1, limit=1
              $region37: #{_lambda_.1} parent=35 // loop_pre_header
                _
              $region38: #{_lambda_.1} parent=35 // loop_header
                %s140 = sphi 0, %s144
                %p141 = scmp.ge.s32.totalorder %s140, 1
                %s145 = sphi %s131, %s131
                %s146 = sphi %s125, %s125
              $region39: #{_lambda_.1} parent=35 // loop_header_branch
                %143 = sbr.rel (%p141) target = $region43
              $region40: #{_lambda_.1} parent=35 // loop_body
                %v147 = vld [vmem:[%s145] sm:$0xff]
                %148 = vst [vmem:[%s146] sm:$0xff] %v147
                %v149 = vld [vmem:[%s145 + $0x10] sm:$0xff]
                %150 = vst [vmem:[%s146 + $0x8] sm:$0xff] %v149
                %v151 = vld [vmem:[%s145 + $0x20] sm:$0xff]
                %152 = vst [vmem:[%s146 + $0x10] sm:$0xff] %v151
                %v153 = vld [vmem:[%s145 + $0x30] sm:$0xff]
                %154 = vst [vmem:[%s146 + $0x18] sm:$0xff] %v153
              $region41: #{_lambda_.1} parent=35 // loop_footer
                %s144 = sadd.s32 1, %s140
              $region42: #{_lambda_.1} parent=35 // loop_footer_branch
                %139 = sbr.rel target = $region38
              $region43: #{_lambda_.1} parent=35 // loop_exit
                _
            $region36: #{_lambda_.1} parent=27 // pred_fallthru
              _
          $region28: #{_lambda_.1} parent=23 // pred_fallthru
            _
          %175 = vnop
        $region24: #{_lambda_.1} parent=19 // pred_fallthru
          _
      $region20: #{_lambda_.1} parent=5 // pred_fallthru
        _
      %p176 = scmp.le.s32.totalorder 1, %s8
      %p177 = scmp.lt.s32.totalorder %s8, 5
      %p178 = pnand %p176, %p177
      %p179 = pneg %p178
      // Predicated region
      $region59: #{_lambda_.1} parent=5 // pred_check
        _
      $region60: #{_lambda_.1} parent=5 // pred_check_branch
        %181 = sbr.rel (%p178) target = $region62
      $region61: #{_lambda_.1} parent=5 // pred_region
        %s182 = ssub.s32 %s8, 1
        %s183 = sand.u32 %s35, 1
        %s184 = sand.u32 %s35, 1
        %s185 = smul.addr %s184, 32
        %s186 = scalar_lea.vmem [#allocation2], %s185
        // Predicated region
        $region63: #{_lambda_.1} parent=61 // pred_check
          %p187 = pneg %p48
        $region64: #{_lambda_.1} parent=61 // pred_check_branch
          %189 = sbr.rel (%p187) target = $region66
        $region65: #{_lambda_.1} parent=61 // pred_region
          _
        $region66: #{_lambda_.1} parent=61 // pred_fallthru
          _
        %s190 = sand.u32 %s35, 1
        %s191 = sand.u32 %s35, 1
        %s192 = smul.addr %s191, 32
        %s193 = scalar_lea.vmem [#allocation2], %s192
        %p194 = pneg %p48
        %p195 = pneg %p45
        %p196 = pneg %p69
        %p197 = pneg %p66
        %p198 = pneg %p97
        %p199 = pneg %p94
        %s200 = sand.u32 %s84, 1
        %s201 = sand.u32 %s84, 1
        %s202 = smul.addr %s201, 256
        %s203 = scalar_lea.vmem [#allocation3], %s202
        %s204 = smul.u32 4, %s18
        %s205 = smul.u32 4, %s18
        %v206 = vld [vmem:[%s186] sm:$0xff]
        %v207 = vld [vmem:[%s186 + $0x8] sm:$0xff]
        %v208 = vld [vmem:[%s186 + $0x10] sm:$0xff]
        %v209 = vld [vmem:[%s186 + $0x18] sm:$0xff]
        %v210 = vld [vmem:[%s1] sm:$0xff]
        %v211 = vld [vmem:[%s1 + $0x8] sm:$0xff]
        %v212 = vld [vmem:[%s1 + $0x10] sm:$0xff]
        %v213 = vld [vmem:[%s1 + $0x18] sm:$0xff]
        %vm214 = vcmask 261120
        %v216 = vsel %vm214, %v206, 0
        %v219 = vsel %vm214, %v207, 0
        %v222 = vsel %vm214, %v208, 0
        %v225 = vsel %vm214, %v209, 0
        %227 = vmatprep.subr.mxu0 0.0
        %228 = vmatpush1.msra.mxu0 %v210
        %229 = vmatprep.subr.mxu0 0.0
        %230 = vmatpush1.msra.mxu0 %v211
        %231 = vmatprep.subr.mxu0 0.0
        %232 = vmatpush1.msra.mxu0 %v212
        %233 = vmatprep.subr.mxu0 0.0
        %234 = vmatpush1.msra.mxu0 %v213
        %235 = vmatprep.subr.mxu0 0.0
        %236 = vmatpush1.msra.mxu0 0.0
        %237 = vmatprep.subr.mxu0 0.0
        %238 = vmatpush1.msra.mxu0 0.0
        %239 = vmatprep.subr.mxu0 0.0
        %240 = vmatpush1.msra.mxu0 0.0
        %241 = vmatprep.subr.mxu0 0.0
        %242 = vmatpush1.msra.mxu0 0.0
        %243 = vmatprep.subr.mxu0 0.0
        %244 = vmatpush1.msra.mxu0 0.0
        %245 = vmatprep.subr.mxu0 0.0
        %246 = vmatpush1.msra.mxu0 0.0
        %247 = vmatprep.subr.mxu0 0.0
        %248 = vmatpush1.msra.mxu0 0.0
        %249 = vmatprep.subr.mxu0 0.0
        %250 = vmatpush1.msra.mxu0 0.0
        %251 = vmatprep.subr.mxu0 0.0
        %252 = vmatpush1.msra.mxu0 0.0
        %253 = vmatprep.subr.mxu0 0.0
        %254 = vmatpush1.msra.mxu0 0.0
        %255 = vmatprep.subr.mxu0 0.0
        %256 = vmatpush1.msra.mxu0 0.0
        %257 = vmatprep.subr.mxu0 0.0
        %258 = vmatpush1.msra.mxu0 0.0
        %259 = vmatprep.subr.mxu0 0.0
        %260 = vmatpush1.msra.mxu0 0.0
        %261 = vmatprep.subr.mxu0 0.0
        %262 = vmatpush1.msra.mxu0 0.0
        %263 = vmatprep.subr.mxu0 0.0
        %264 = vmatpush1.msra.mxu0 0.0
        %265 = vmatprep.subr.mxu0 0.0
        %266 = vmatpush1.msra.mxu0 0.0
        %267 = vmatprep.subr.mxu0 0.0
        %268 = vmatpush1.msra.mxu0 0.0
        %269 = vmatprep.subr.mxu0 0.0
        %270 = vmatpush1.msra.mxu0 0.0
        %271 = vmatprep.subr.mxu0 0.0
        %272 = vmatpush1.msra.mxu0 0.0
        %273 = vmatprep.subr.mxu0 0.0
        %274 = vmatpush1.msra.mxu0 0.0
        %275 = vmatprep.subr.mxu0 0.0
        %276 = vmatpush1.msra.mxu0 0.0
        %277 = vmatprep.subr.mxu0 0.0
        %278 = vmatpush1.msra.mxu0 0.0
        %279 = vmatprep.subr.mxu0 0.0
        %280 = vmatpush1.msra.mxu0 0.0
        %281 = vmatprep.subr.mxu0 0.0
        %282 = vmatpush1.msra.mxu0 0.0
        %283 = vmatprep.subr.mxu0 0.0
        %284 = vmatpush1.msra.mxu0 0.0
        %285 = vmatprep.subr.mxu0 0.0
        %286 = vmatpush1.msra.mxu0 0.0
        %287 = vmatprep.subr.mxu0 0.0
        %288 = vmatpush1.msra.mxu0 0.0
        %289 = vmatprep.subr.mxu0 0.0
        %290 = vmatpush1.msra.mxu0 0.0
        %291 = vmatprep.mubr.f32.mxu0 0.0
        %292 = vmatmul.mubr.f32.gmra.mrb[0].mxu0 %v216
        %v293 = vpop.f32.mrb[0].mxu0
        %v294 = vadd.f32 0.0, %v293
        %v295 = vpop.f32.mrb[0].mxu0
        %296 = vmatprep.mubr.f32.mxu0 0.0
        %297 = vmatmul.mubr.f32.gmra.mrb[0].mxu0 %v219
        %v298 = vpop.f32.mrb[0].mxu0
        %v299 = vadd.f32 0.0, %v298
        %v300 = vpop.f32.mrb[0].mxu0
        %301 = vmatprep.mubr.f32.mxu0 0.0
        %302 = vmatmul.mubr.f32.gmra.mrb[0].mxu0 %v222
        %v303 = vpop.f32.mrb[0].mxu0
        %v304 = vadd.f32 0.0, %v303
        %v305 = vpop.f32.mrb[0].mxu0
        %306 = vmatprep.mubr.f32.mxu0 0.0
        %307 = vmatmul.mubr.f32.gmra.mrb[0].mxu0 %v225
        %v308 = vpop.f32.mrb[0].mxu0
        %v309 = vadd.f32 0.0, %v308
        %v310 = vpop.f32.mrb[0].mxu0
        %311 = vdwg.mxu0
        %vm312 = vcmask 64512
        %313 = vst.msk [vmem:[%s203] sm:$0xff] %vm312, %v294
        %314 = vst.msk [vmem:[%s203 + $0x8] sm:$0xff] %vm312, %v299
        %315 = vst.msk [vmem:[%s203 + $0x10] sm:$0xff] %vm312, %v304
        %316 = vst.msk [vmem:[%s203 + $0x18] sm:$0xff] %vm312, %v309
        %s317 = scalar_lea.vmem %s1, 32
        %v318 = vld [vmem:[%s317] sm:$0xff]
        %v319 = vld [vmem:[%s317 + $0x8] sm:$0xff]
        %v320 = vld [vmem:[%s317 + $0x10] sm:$0xff]
        %v321 = vld [vmem:[%s317 + $0x18] sm:$0xff]
        %322 = vmatprep.subr.mxu0 0.0
        %323 = vmatpush1.msra.mxu0 %v318
        %324 = vmatprep.subr.mxu0 0.0
        %325 = vmatpush1.msra.mxu0 %v319
        %326 = vmatprep.subr.mxu0 0.0
        %327 = vmatpush1.msra.mxu0 %v320
        %328 = vmatprep.subr.mxu0 0.0
        %329 = vmatpush1.msra.mxu0 %v321
        %330 = vmatprep.subr.mxu0 0.0
        %331 = vmatpush1.msra.mxu0 0.0
        %332 = vmatprep.subr.mxu0 0.0
        %333 = vmatpush1.msra.mxu0 0.0
        %334 = vmatprep.subr.mxu0 0.0
        %335 = vmatpush1.msra.mxu0 0.0
        %336 = vmatprep.subr.mxu0 0.0
        %337 = vmatpush1.msra.mxu0 0.0
        %338 = vmatprep.subr.mxu0 0.0
        %339 = vmatpush1.msra.mxu0 0.0
        %340 = vmatprep.subr.mxu0 0.0
        %341 = vmatpush1.msra.mxu0 0.0
        %342 = vmatprep.subr.mxu0 0.0
        %343 = vmatpush1.msra.mxu0 0.0
        %344 = vmatprep.subr.mxu0 0.0
        %345 = vmatpush1.msra.mxu0 0.0
        %346 = vmatprep.subr.mxu0 0.0
        %347 = vmatpush1.msra.mxu0 0.0
        %348 = vmatprep.subr.mxu0 0.0
        %349 = vmatpush1.msra.mxu0 0.0
        %350 = vmatprep.subr.mxu0 0.0
        %351 = vmatpush1.msra.mxu0 0.0
        %352 = vmatprep.subr.mxu0 0.0
        %353 = vmatpush1.msra.mxu0 0.0
        %354 = vmatprep.subr.mxu0 0.0
        %355 = vmatpush1.msra.mxu0 0.0
        %356 = vmatprep.subr.mxu0 0.0
        %357 = vmatpush1.msra.mxu0 0.0
        %358 = vmatprep.subr.mxu0 0.0
        %359 = vmatpush1.msra.mxu0 0.0
        %360 = vmatprep.subr.mxu0 0.0
        %361 = vmatpush1.msra.mxu0 0.0
        %362 = vmatprep.subr.mxu0 0.0
        %363 = vmatpush1.msra.mxu0 0.0
        %364 = vmatprep.subr.mxu0 0.0
        %365 = vmatpush1.msra.mxu0 0.0
        %366 = vmatprep.subr.mxu0 0.0
        %367 = vmatpush1.msra.mxu0 0.0
        %368 = vmatprep.subr.mxu0 0.0
        %369 = vmatpush1.msra.mxu0 0.0
        %370 = vmatprep.subr.mxu0 0.0
        %371 = vmatpush1.msra.mxu0 0.0
        %372 = vmatprep.subr.mxu0 0.0
        %373 = vmatpush1.msra.mxu0 0.0
        %374 = vmatprep.subr.mxu0 0.0
        %375 = vmatpush1.msra.mxu0 0.0
        %376 = vmatprep.subr.mxu0 0.0
        %377 = vmatpush1.msra.mxu0 0.0
        %378 = vmatprep.subr.mxu0 0.0
        %379 = vmatpush1.msra.mxu0 0.0
        %380 = vmatprep.subr.mxu0 0.0
        %381 = vmatpush1.msra.mxu0 0.0
        %382 = vmatprep.subr.mxu0 0.0
        %383 = vmatpush1.msra.mxu0 0.0
        %384 = vmatprep.subr.mxu0 0.0
        %385 = vmatpush1.msra.mxu0 0.0
        %386 = vmatprep.mubr.f32.mxu0 0.0
        %387 = vmatmul.mubr.f32.gmra.mrb[0].mxu0 %v216
        %v388 = vpop.f32.mrb[0].mxu0
        %v389 = vadd.f32 0.0, %v388
        %v390 = vpop.f32.mrb[0].mxu0
        %391 = vmatprep.mubr.f32.mxu0 0.0
        %392 = vmatmul.mubr.f32.gmra.mrb[0].mxu0 %v219
        %v393 = vpop.f32.mrb[0].mxu0
        %v394 = vadd.f32 0.0, %v393
        %v395 = vpop.f32.mrb[0].mxu0
        %396 = vmatprep.mubr.f32.mxu0 0.0
        %397 = vmatmul.mubr.f32.gmra.mrb[0].mxu0 %v222
        %v398 = vpop.f32.mrb[0].mxu0
        %v399 = vadd.f32 0.0, %v398
        %v400 = vpop.f32.mrb[0].mxu0
        %401 = vmatprep.mubr.f32.mxu0 0.0
        %402 = vmatmul.mubr.f32.gmra.mrb[0].mxu0 %v225
        %v403 = vpop.f32.mrb[0].mxu0
        %v404 = vadd.f32 0.0, %v403
        %v405 = vpop.f32.mrb[0].mxu0
        %406 = vdwg.mxu0
        %s407 = scalar_lea.vmem %s203, 32 [#allocation3]
        %408 = vst.msk [vmem:[%s407] sm:$0xff] %vm312, %v389
        %409 = vst.msk [vmem:[%s407 + $0x8] sm:$0xff] %vm312, %v394
        %410 = vst.msk [vmem:[%s407 + $0x10] sm:$0xff] %vm312, %v399
        %411 = vst.msk [vmem:[%s407 + $0x18] sm:$0xff] %vm312, %v404
        %s412 = scalar_lea.vmem %s1, 64
        %v413 = vld [vmem:[%s412] sm:$0xff]
        %v414 = vld [vmem:[%s412 + $0x8] sm:$0xff]
        %v415 = vld [vmem:[%s412 + $0x10] sm:$0xff]
        %v416 = vld [vmem:[%s412 + $0x18] sm:$0xff]
        %417 = vmatprep.subr.mxu0 0.0
        %418 = vmatpush1.msra.mxu0 %v413
        %419 = vmatprep.subr.mxu0 0.0
        %420 = vmatpush1.msra.mxu0 %v414
        %421 = vmatprep.subr.mxu0 0.0
        %422 = vmatpush1.msra.mxu0 %v415
        %423 = vmatprep.subr.mxu0 0.0
        %424 = vmatpush1.msra.mxu0 %v416
        %425 = vmatprep.subr.mxu0 0.0
        %426 = vmatpush1.msra.mxu0 0.0
        %427 = vmatprep.subr.mxu0 0.0
        %428 = vmatpush1.msra.mxu0 0.0
        %429 = vmatprep.subr.mxu0 0.0
        %430 = vmatpush1.msra.mxu0 0.0
        %431 = vmatprep.subr.mxu0 0.0
        %432 = vmatpush1.msra.mxu0 0.0
        %433 = vmatprep.subr.mxu0 0.0
        %434 = vmatpush1.msra.mxu0 0.0
        %435 = vmatprep.subr.mxu0 0.0
        %436 = vmatpush1.msra.mxu0 0.0
        %437 = vmatprep.subr.mxu0 0.0
        %438 = vmatpush1.msra.mxu0 0.0
        %439 = vmatprep.subr.mxu0 0.0
        %440 = vmatpush1.msra.mxu0 0.0
        %441 = vmatprep.subr.mxu0 0.0
        %442 = vmatpush1.msra.mxu0 0.0
        %443 = vmatprep.subr.mxu0 0.0
        %444 = vmatpush1.msra.mxu0 0.0
        %445 = vmatprep.subr.mxu0 0.0
        %446 = vmatpush1.msra.mxu0 0.0
        %447 = vmatprep.subr.mxu0 0.0
        %448 = vmatpush1.msra.mxu0 0.0
        %449 = vmatprep.subr.mxu0 0.0
        %450 = vmatpush1.msra.mxu0 0.0
        %451 = vmatprep.subr.mxu0 0.0
        %452 = vmatpush1.msra.mxu0 0.0
        %453 = vmatprep.subr.mxu0 0.0
        %454 = vmatpush1.msra.mxu0 0.0
        %455 = vmatprep.subr.mxu0 0.0
        %456 = vmatpush1.msra.mxu0 0.0
        %457 = vmatprep.subr.mxu0 0.0
        %458 = vmatpush1.msra.mxu0 0.0
        %459 = vmatprep.subr.mxu0 0.0
        %460 = vmatpush1.msra.mxu0 0.0
        %461 = vmatprep.subr.mxu0 0.0
        %462 = vmatpush1.msra.mxu0 0.0
        %463 = vmatprep.subr.mxu0 0.0
        %464 = vmatpush1.msra.mxu0 0.0
        %465 = vmatprep.subr.mxu0 0.0
        %466 = vmatpush1.msra.mxu0 0.0
        %467 = vmatprep.subr.mxu0 0.0
        %468 = vmatpush1.msra.mxu0 0.0
        %469 = vmatprep.subr.mxu0 0.0
        %470 = vmatpush1.msra.mxu0 0.0
        %471 = vmatprep.subr.mxu0 0.0
        %472 = vmatpush1.msra.mxu0 0.0
        %473 = vmatprep.subr.mxu0 0.0
        %474 = vmatpush1.msra.mxu0 0.0
        %475 = vmatprep.subr.mxu0 0.0
        %476 = vmatpush1.msra.mxu0 0.0
        %477 = vmatprep.subr.mxu0 0.0
        %478 = vmatpush1.msra.mxu0 0.0
        %479 = vmatprep.subr.mxu0 0.0
        %480 = vmatpush1.msra.mxu0 0.0
        %481 = vmatprep.mubr.f32.mxu0 0.0
        %482 = vmatmul.mubr.f32.gmra.mrb[0].mxu0 %v216
        %v483 = vpop.f32.mrb[0].mxu0
        %v484 = vadd.f32 0.0, %v483
        %v485 = vpop.f32.mrb[0].mxu0
        %486 = vmatprep.mubr.f32.mxu0 0.0
        %487 = vmatmul.mubr.f32.gmra.mrb[0].mxu0 %v219
        %v488 = vpop.f32.mrb[0].mxu0
        %v489 = vadd.f32 0.0, %v488
        %v490 = vpop.f32.mrb[0].mxu0
        %491 = vmatprep.mubr.f32.mxu0 0.0
        %492 = vmatmul.mubr.f32.gmra.mrb[0].mxu0 %v222
        %v493 = vpop.f32.mrb[0].mxu0
        %v494 = vadd.f32 0.0, %v493
        %v495 = vpop.f32.mrb[0].mxu0
        %496 = vmatprep.mubr.f32.mxu0 0.0
        %497 = vmatmul.mubr.f32.gmra.mrb[0].mxu0 %v225
        %v498 = vpop.f32.mrb[0].mxu0
        %v499 = vadd.f32 0.0, %v498
        %v500 = vpop.f32.mrb[0].mxu0
        %501 = vdwg.mxu0
        %s502 = scalar_lea.vmem %s203, 64 [#allocation3]
        %503 = vst.msk [vmem:[%s502] sm:$0xff] %vm312, %v484
        %504 = vst.msk [vmem:[%s502 + $0x8] sm:$0xff] %vm312, %v489
        %505 = vst.msk [vmem:[%s502 + $0x10] sm:$0xff] %vm312, %v494
        %506 = vst.msk [vmem:[%s502 + $0x18] sm:$0xff] %vm312, %v499
        %s507 = scalar_lea.vmem %s1, 96
        %v508 = vld [vmem:[%s507] sm:$0xff]
        %v509 = vld [vmem:[%s507 + $0x8] sm:$0xff]
        %v510 = vld [vmem:[%s507 + $0x10] sm:$0xff]
        %v511 = vld [vmem:[%s507 + $0x18] sm:$0xff]
        %512 = vmatprep.subr.mxu0 0.0
        %513 = vmatpush1.msra.mxu0 %v508
        %514 = vmatprep.subr.mxu0 0.0
        %515 = vmatpush1.msra.mxu0 %v509
        %516 = vmatprep.subr.mxu0 0.0
        %517 = vmatpush1.msra.mxu0 %v510
        %518 = vmatprep.subr.mxu0 0.0
        %519 = vmatpush1.msra.mxu0 %v511
        %520 = vmatprep.subr.mxu0 0.0
        %521 = vmatpush1.msra.mxu0 0.0
        %522 = vmatprep.subr.mxu0 0.0
        %523 = vmatpush1.msra.mxu0 0.0
        %524 = vmatprep.subr.mxu0 0.0
        %525 = vmatpush1.msra.mxu0 0.0
        %526 = vmatprep.subr.mxu0 0.0
        %527 = vmatpush1.msra.mxu0 0.0
        %528 = vmatprep.subr.mxu0 0.0
        %529 = vmatpush1.msra.mxu0 0.0
        %530 = vmatprep.subr.mxu0 0.0
        %531 = vmatpush1.msra.mxu0 0.0
        %532 = vmatprep.subr.mxu0 0.0
        %533 = vmatpush1.msra.mxu0 0.0
        %534 = vmatprep.subr.mxu0 0.0
        %535 = vmatpush1.msra.mxu0 0.0
        %536 = vmatprep.subr.mxu0 0.0
        %537 = vmatpush1.msra.mxu0 0.0
        %538 = vmatprep.subr.mxu0 0.0
        %539 = vmatpush1.msra.mxu0 0.0
        %540 = vmatprep.subr.mxu0 0.0
        %541 = vmatpush1.msra.mxu0 0.0
        %542 = vmatprep.subr.mxu0 0.0
        %543 = vmatpush1.msra.mxu0 0.0
        %544 = vmatprep.subr.mxu0 0.0
        %545 = vmatpush1.msra.mxu0 0.0
        %546 = vmatprep.subr.mxu0 0.0
        %547 = vmatpush1.msra.mxu0 0.0
        %548 = vmatprep.subr.mxu0 0.0
        %549 = vmatpush1.msra.mxu0 0.0
        %550 = vmatprep.subr.mxu0 0.0
        %551 = vmatpush1.msra.mxu0 0.0
        %552 = vmatprep.subr.mxu0 0.0
        %553 = vmatpush1.msra.mxu0 0.0
        %554 = vmatprep.subr.mxu0 0.0
        %555 = vmatpush1.msra.mxu0 0.0
        %556 = vmatprep.subr.mxu0 0.0
        %557 = vmatpush1.msra.mxu0 0.0
        %558 = vmatprep.subr.mxu0 0.0
        %559 = vmatpush1.msra.mxu0 0.0
        %560 = vmatprep.subr.mxu0 0.0
        %561 = vmatpush1.msra.mxu0 0.0
        %562 = vmatprep.subr.mxu0 0.0
        %563 = vmatpush1.msra.mxu0 0.0
        %564 = vmatprep.subr.mxu0 0.0
        %565 = vmatpush1.msra.mxu0 0.0
        %566 = vmatprep.subr.mxu0 0.0
        %567 = vmatpush1.msra.mxu0 0.0
        %568 = vmatprep.subr.mxu0 0.0
        %569 = vmatpush1.msra.mxu0 0.0
        %570 = vmatprep.subr.mxu0 0.0
        %571 = vmatpush1.msra.mxu0 0.0
        %572 = vmatprep.subr.mxu0 0.0
        %573 = vmatpush1.msra.mxu0 0.0
        %574 = vmatprep.subr.mxu0 0.0
        %575 = vmatpush1.msra.mxu0 0.0
        %576 = vmatprep.mubr.f32.mxu0 0.0
        %577 = vmatmul.mubr.f32.gmra.mrb[0].mxu0 %v216
        %v578 = vpop.f32.mrb[0].mxu0
        %v579 = vadd.f32 0.0, %v578
        %v580 = vpop.f32.mrb[0].mxu0
        %581 = vmatprep.mubr.f32.mxu0 0.0
        %582 = vmatmul.mubr.f32.gmra.mrb[0].mxu0 %v219
        %v583 = vpop.f32.mrb[0].mxu0
        %v584 = vadd.f32 0.0, %v583
        %v585 = vpop.f32.mrb[0].mxu0
        %586 = vmatprep.mubr.f32.mxu0 0.0
        %587 = vmatmul.mubr.f32.gmra.mrb[0].mxu0 %v222
        %v588 = vpop.f32.mrb[0].mxu0
        %v589 = vadd.f32 0.0, %v588
        %v590 = vpop.f32.mrb[0].mxu0
        %591 = vmatprep.mubr.f32.mxu0 0.0
        %592 = vmatmul.mubr.f32.gmra.mrb[0].mxu0 %v225
        %v593 = vpop.f32.mrb[0].mxu0
        %v594 = vadd.f32 0.0, %v593
        %v595 = vpop.f32.mrb[0].mxu0
        %596 = vdwg.mxu0
        %s597 = scalar_lea.vmem %s203, 96 [#allocation3]
        %598 = vst.msk [vmem:[%s597] sm:$0xff] %vm312, %v579
        %599 = vst.msk [vmem:[%s597 + $0x8] sm:$0xff] %vm312, %v584
        %600 = vst.msk [vmem:[%s597 + $0x10] sm:$0xff] %vm312, %v589
        %601 = vst.msk [vmem:[%s597 + $0x18] sm:$0xff] %vm312, %v594
        %s602 = scalar_lea.vmem %s1, 128
        %v603 = vld [vmem:[%s602] sm:$0xff]
        %v604 = vld [vmem:[%s602 + $0x8] sm:$0xff]
        %v605 = vld [vmem:[%s602 + $0x10] sm:$0xff]
        %v606 = vld [vmem:[%s602 + $0x18] sm:$0xff]
        %607 = vmatprep.subr.mxu0 0.0
        %608 = vmatpush1.msra.mxu0 %v603
        %609 = vmatprep.subr.mxu0 0.0
        %610 = vmatpush1.msra.mxu0 %v604
        %611 = vmatprep.subr.mxu0 0.0
        %612 = vmatpush1.msra.mxu0 %v605
        %613 = vmatprep.subr.mxu0 0.0
        %614 = vmatpush1.msra.mxu0 %v606
        %615 = vmatprep.subr.mxu0 0.0
        %616 = vmatpush1.msra.mxu0 0.0
        %617 = vmatprep.subr.mxu0 0.0
        %618 = vmatpush1.msra.mxu0 0.0
        %619 = vmatprep.subr.mxu0 0.0
        %620 = vmatpush1.msra.mxu0 0.0
        %621 = vmatprep.subr.mxu0 0.0
        %622 = vmatpush1.msra.mxu0 0.0
        %623 = vmatprep.subr.mxu0 0.0
        %624 = vmatpush1.msra.mxu0 0.0
        %625 = vmatprep.subr.mxu0 0.0
        %626 = vmatpush1.msra.mxu0 0.0
        %627 = vmatprep.subr.mxu0 0.0
        %628 = vmatpush1.msra.mxu0 0.0
        %629 = vmatprep.subr.mxu0 0.0
        %630 = vmatpush1.msra.mxu0 0.0
        %631 = vmatprep.subr.mxu0 0.0
        %632 = vmatpush1.msra.mxu0 0.0
        %633 = vmatprep.subr.mxu0 0.0
        %634 = vmatpush1.msra.mxu0 0.0
        %635 = vmatprep.subr.mxu0 0.0
        %636 = vmatpush1.msra.mxu0 0.0
        %637 = vmatprep.subr.mxu0 0.0
        %638 = vmatpush1.msra.mxu0 0.0
        %639 = vmatprep.subr.mxu0 0.0
        %640 = vmatpush1.msra.mxu0 0.0
        %641 = vmatprep.subr.mxu0 0.0
        %642 = vmatpush1.msra.mxu0 0.0
        %643 = vmatprep.subr.mxu0 0.0
        %644 = vmatpush1.msra.mxu0 0.0
        %645 = vmatprep.subr.mxu0 0.0
        %646 = vmatpush1.msra.mxu0 0.0
        %647 = vmatprep.subr.mxu0 0.0
        %648 = vmatpush1.msra.mxu0 0.0
        %649 = vmatprep.subr.mxu0 0.0
        %650 = vmatpush1.msra.mxu0 0.0
        %651 = vmatprep.subr.mxu0 0.0
        %652 = vmatpush1.msra.mxu0 0.0
        %653 = vmatprep.subr.mxu0 0.0
        %654 = vmatpush1.msra.mxu0 0.0
        %655 = vmatprep.subr.mxu0 0.0
        %656 = vmatpush1.msra.mxu0 0.0
        %657 = vmatprep.subr.mxu0 0.0
        %658 = vmatpush1.msra.mxu0 0.0
        %659 = vmatprep.subr.mxu0 0.0
        %660 = vmatpush1.msra.mxu0 0.0
        %661 = vmatprep.subr.mxu0 0.0
        %662 = vmatpush1.msra.mxu0 0.0
        %663 = vmatprep.subr.mxu0 0.0
        %664 = vmatpush1.msra.mxu0 0.0
        %665 = vmatprep.subr.mxu0 0.0
        %666 = vmatpush1.msra.mxu0 0.0
        %667 = vmatprep.subr.mxu0 0.0
        %668 = vmatpush1.msra.mxu0 0.0
        %669 = vmatprep.subr.mxu0 0.0
        %670 = vmatpush1.msra.mxu0 0.0
        %671 = vmatprep.mubr.f32.mxu0 0.0
        %672 = vmatmul.mubr.f32.gmra.mrb[0].mxu0 %v216
        %v673 = vpop.f32.mrb[0].mxu0
        %v674 = vadd.f32 0.0, %v673
        %v675 = vpop.f32.mrb[0].mxu0
        %676 = vmatprep.mubr.f32.mxu0 0.0
        %677 = vmatmul.mubr.f32.gmra.mrb[0].mxu0 %v219
        %v678 = vpop.f32.mrb[0].mxu0
        %v679 = vadd.f32 0.0, %v678
        %v680 = vpop.f32.mrb[0].mxu0
        %681 = vmatprep.mubr.f32.mxu0 0.0
        %682 = vmatmul.mubr.f32.gmra.mrb[0].mxu0 %v222
        %v683 = vpop.f32.mrb[0].mxu0
        %v684 = vadd.f32 0.0, %v683
        %v685 = vpop.f32.mrb[0].mxu0
        %686 = vmatprep.mubr.f32.mxu0 0.0
        %687 = vmatmul.mubr.f32.gmra.mrb[0].mxu0 %v225
        %v688 = vpop.f32.mrb[0].mxu0
        %v689 = vadd.f32 0.0, %v688
        %v690 = vpop.f32.mrb[0].mxu0
        %691 = vdwg.mxu0
        %s692 = scalar_lea.vmem %s203, 128 [#allocation3]
        %693 = vst.msk [vmem:[%s692] sm:$0xff] %vm312, %v674
        %694 = vst.msk [vmem:[%s692 + $0x8] sm:$0xff] %vm312, %v679
        %695 = vst.msk [vmem:[%s692 + $0x10] sm:$0xff] %vm312, %v684
        %696 = vst.msk [vmem:[%s692 + $0x18] sm:$0xff] %vm312, %v689
        %s697 = scalar_lea.vmem %s1, 160
        %v698 = vld [vmem:[%s697] sm:$0xff]
        %v699 = vld [vmem:[%s697 + $0x8] sm:$0xff]
        %v700 = vld [vmem:[%s697 + $0x10] sm:$0xff]
        %v701 = vld [vmem:[%s697 + $0x18] sm:$0xff]
        %702 = vmatprep.subr.mxu0 0.0
        %703 = vmatpush1.msra.mxu0 %v698
        %704 = vmatprep.subr.mxu0 0.0
        %705 = vmatpush1.msra.mxu0 %v699
        %706 = vmatprep.subr.mxu0 0.0
        %707 = vmatpush1.msra.mxu0 %v700
        %708 = vmatprep.subr.mxu0 0.0
        %709 = vmatpush1.msra.mxu0 %v701
        %710 = vmatprep.subr.mxu0 0.0
        %711 = vmatpush1.msra.mxu0 0.0
        %712 = vmatprep.subr.mxu0 0.0
        %713 = vmatpush1.msra.mxu0 0.0
        %714 = vmatprep.subr.mxu0 0.0
        %715 = vmatpush1.msra.mxu0 0.0
        %716 = vmatprep.subr.mxu0 0.0
        %717 = vmatpush1.msra.mxu0 0.0
        %718 = vmatprep.subr.mxu0 0.0
        %719 = vmatpush1.msra.mxu0 0.0
        %720 = vmatprep.subr.mxu0 0.0
        %721 = vmatpush1.msra.mxu0 0.0
        %722 = vmatprep.subr.mxu0 0.0
        %723 = vmatpush1.msra.mxu0 0.0
        %724 = vmatprep.subr.mxu0 0.0
        %725 = vmatpush1.msra.mxu0 0.0
        %726 = vmatprep.subr.mxu0 0.0
        %727 = vmatpush1.msra.mxu0 0.0
        %728 = vmatprep.subr.mxu0 0.0
        %729 = vmatpush1.msra.mxu0 0.0
        %730 = vmatprep.subr.mxu0 0.0
        %731 = vmatpush1.msra.mxu0 0.0
        %732 = vmatprep.subr.mxu0 0.0
        %733 = vmatpush1.msra.mxu0 0.0
        %734 = vmatprep.subr.mxu0 0.0
        %735 = vmatpush1.msra.mxu0 0.0
        %736 = vmatprep.subr.mxu0 0.0
        %737 = vmatpush1.msra.mxu0 0.0
        %738 = vmatprep.subr.mxu0 0.0
        %739 = vmatpush1.msra.mxu0 0.0
        %740 = vmatprep.subr.mxu0 0.0
        %741 = vmatpush1.msra.mxu0 0.0
        %742 = vmatprep.subr.mxu0 0.0
        %743 = vmatpush1.msra.mxu0 0.0
        %744 = vmatprep.subr.mxu0 0.0
        %745 = vmatpush1.msra.mxu0 0.0
        %746 = vmatprep.subr.mxu0 0.0
        %747 = vmatpush1.msra.mxu0 0.0
        %748 = vmatprep.subr.mxu0 0.0
        %749 = vmatpush1.msra.mxu0 0.0
        %750 = vmatprep.subr.mxu0 0.0
        %751 = vmatpush1.msra.mxu0 0.0
        %752 = vmatprep.subr.mxu0 0.0
        %753 = vmatpush1.msra.mxu0 0.0
        %754 = vmatprep.subr.mxu0 0.0
        %755 = vmatpush1.msra.mxu0 0.0
        %756 = vmatprep.subr.mxu0 0.0
        %757 = vmatpush1.msra.mxu0 0.0
        %758 = vmatprep.subr.mxu0 0.0
        %759 = vmatpush1.msra.mxu0 0.0
        %760 = vmatprep.subr.mxu0 0.0
        %761 = vmatpush1.msra.mxu0 0.0
        %762 = vmatprep.subr.mxu0 0.0
        %763 = vmatpush1.msra.mxu0 0.0
        %764 = vmatprep.subr.mxu0 0.0
        %765 = vmatpush1.msra.mxu0 0.0
        %766 = vmatprep.mubr.f32.mxu0 0.0
        %767 = vmatmul.mubr.f32.gmra.mrb[0].mxu0 %v216
        %v768 = vpop.f32.mrb[0].mxu0
        %v769 = vadd.f32 0.0, %v768
        %v770 = vpop.f32.mrb[0].mxu0
        %771 = vmatprep.mubr.f32.mxu0 0.0
        %772 = vmatmul.mubr.f32.gmra.mrb[0].mxu0 %v219
        %v773 = vpop.f32.mrb[0].mxu0
        %v774 = vadd.f32 0.0, %v773
        %v775 = vpop.f32.mrb[0].mxu0
        %776 = vmatprep.mubr.f32.mxu0 0.0
        %777 = vmatmul.mubr.f32.gmra.mrb[0].mxu0 %v222
        %v778 = vpop.f32.mrb[0].mxu0
        %v779 = vadd.f32 0.0, %v778
        %v780 = vpop.f32.mrb[0].mxu0
        %781 = vmatprep.mubr.f32.mxu0 0.0
        %782 = vmatmul.mubr.f32.gmra.mrb[0].mxu0 %v225
        %v783 = vpop.f32.mrb[0].mxu0
        %v784 = vadd.f32 0.0, %v783
        %v785 = vpop.f32.mrb[0].mxu0
        %786 = vdwg.mxu0
        %s787 = scalar_lea.vmem %s203, 160 [#allocation3]
        %788 = vst.msk [vmem:[%s787] sm:$0xff] %vm312, %v769
        %789 = vst.msk [vmem:[%s787 + $0x8] sm:$0xff] %vm312, %v774
        %790 = vst.msk [vmem:[%s787 + $0x10] sm:$0xff] %vm312, %v779
        %791 = vst.msk [vmem:[%s787 + $0x18] sm:$0xff] %vm312, %v784
        %s792 = scalar_lea.vmem %s1, 192
        %v793 = vld [vmem:[%s792] sm:$0xff]
        %v794 = vld [vmem:[%s792 + $0x8] sm:$0xff]
        %v795 = vld [vmem:[%s792 + $0x10] sm:$0xff]
        %v796 = vld [vmem:[%s792 + $0x18] sm:$0xff]
        %797 = vmatprep.subr.mxu0 0.0
        %798 = vmatpush1.msra.mxu0 %v793
        %799 = vmatprep.subr.mxu0 0.0
        %800 = vmatpush1.msra.mxu0 %v794
        %801 = vmatprep.subr.mxu0 0.0
        %802 = vmatpush1.msra.mxu0 %v795
        %803 = vmatprep.subr.mxu0 0.0
        %804 = vmatpush1.msra.mxu0 %v796
        %805 = vmatprep.subr.mxu0 0.0
        %806 = vmatpush1.msra.mxu0 0.0
        %807 = vmatprep.subr.mxu0 0.0
        %808 = vmatpush1.msra.mxu0 0.0
        %809 = vmatprep.subr.mxu0 0.0
        %810 = vmatpush1.msra.mxu0 0.0
        %811 = vmatprep.subr.mxu0 0.0
        %812 = vmatpush1.msra.mxu0 0.0
        %813 = vmatprep.subr.mxu0 0.0
        %814 = vmatpush1.msra.mxu0 0.0
        %815 = vmatprep.subr.mxu0 0.0
        %816 = vmatpush1.msra.mxu0 0.0
        %817 = vmatprep.subr.mxu0 0.0
        %818 = vmatpush1.msra.mxu0 0.0
        %819 = vmatprep.subr.mxu0 0.0
        %820 = vmatpush1.msra.mxu0 0.0
        %821 = vmatprep.subr.mxu0 0.0
        %822 = vmatpush1.msra.mxu0 0.0
        %823 = vmatprep.subr.mxu0 0.0
        %824 = vmatpush1.msra.mxu0 0.0
        %825 = vmatprep.subr.mxu0 0.0
        %826 = vmatpush1.msra.mxu0 0.0
        %827 = vmatprep.subr.mxu0 0.0
        %828 = vmatpush1.msra.mxu0 0.0
        %829 = vmatprep.subr.mxu0 0.0
        %830 = vmatpush1.msra.mxu0 0.0
        %831 = vmatprep.subr.mxu0 0.0
        %832 = vmatpush1.msra.mxu0 0.0
        %833 = vmatprep.subr.mxu0 0.0
        %834 = vmatpush1.msra.mxu0 0.0
        %835 = vmatprep.subr.mxu0 0.0
        %836 = vmatpush1.msra.mxu0 0.0
        %837 = vmatprep.subr.mxu0 0.0
        %838 = vmatpush1.msra.mxu0 0.0
        %839 = vmatprep.subr.mxu0 0.0
        %840 = vmatpush1.msra.mxu0 0.0
        %841 = vmatprep.subr.mxu0 0.0
        %842 = vmatpush1.msra.mxu0 0.0
        %843 = vmatprep.subr.mxu0 0.0
        %844 = vmatpush1.msra.mxu0 0.0
        %845 = vmatprep.subr.mxu0 0.0
        %846 = vmatpush1.msra.mxu0 0.0
        %847 = vmatprep.subr.mxu0 0.0
        %848 = vmatpush1.msra.mxu0 0.0
        %849 = vmatprep.subr.mxu0 0.0
        %850 = vmatpush1.msra.mxu0 0.0
        %851 = vmatprep.subr.mxu0 0.0
        %852 = vmatpush1.msra.mxu0 0.0
        %853 = vmatprep.subr.mxu0 0.0
        %854 = vmatpush1.msra.mxu0 0.0
        %855 = vmatprep.subr.mxu0 0.0
        %856 = vmatpush1.msra.mxu0 0.0
        %857 = vmatprep.subr.mxu0 0.0
        %858 = vmatpush1.msra.mxu0 0.0
        %859 = vmatprep.subr.mxu0 0.0
        %860 = vmatpush1.msra.mxu0 0.0
        %861 = vmatprep.mubr.f32.mxu0 0.0
        %862 = vmatmul.mubr.f32.gmra.mrb[0].mxu0 %v216
        %v863 = vpop.f32.mrb[0].mxu0
        %v864 = vadd.f32 0.0, %v863
        %v865 = vpop.f32.mrb[0].mxu0
        %866 = vmatprep.mubr.f32.mxu0 0.0
        %867 = vmatmul.mubr.f32.gmra.mrb[0].mxu0 %v219
        %v868 = vpop.f32.mrb[0].mxu0
        %v869 = vadd.f32 0.0, %v868
        %v870 = vpop.f32.mrb[0].mxu0
        %871 = vmatprep.mubr.f32.mxu0 0.0
        %872 = vmatmul.mubr.f32.gmra.mrb[0].mxu0 %v222
        %v873 = vpop.f32.mrb[0].mxu0
        %v874 = vadd.f32 0.0, %v873
        %v875 = vpop.f32.mrb[0].mxu0
        %876 = vmatprep.mubr.f32.mxu0 0.0
        %877 = vmatmul.mubr.f32.gmra.mrb[0].mxu0 %v225
        %v878 = vpop.f32.mrb[0].mxu0
        %v879 = vadd.f32 0.0, %v878
        %v880 = vpop.f32.mrb[0].mxu0
        %881 = vdwg.mxu0
        %s882 = scalar_lea.vmem %s203, 192 [#allocation3]
        %883 = vst.msk [vmem:[%s882] sm:$0xff] %vm312, %v864
        %884 = vst.msk [vmem:[%s882 + $0x8] sm:$0xff] %vm312, %v869
        %885 = vst.msk [vmem:[%s882 + $0x10] sm:$0xff] %vm312, %v874
        %886 = vst.msk [vmem:[%s882 + $0x18] sm:$0xff] %vm312, %v879
        %s887 = scalar_lea.vmem %s1, 224
        %v888 = vld [vmem:[%s887] sm:$0xff]
        %v889 = vld [vmem:[%s887 + $0x8] sm:$0xff]
        %v890 = vld [vmem:[%s887 + $0x10] sm:$0xff]
        %v891 = vld [vmem:[%s887 + $0x18] sm:$0xff]
        %892 = vmatprep.subr.mxu0 0.0
        %893 = vmatpush1.msra.mxu0 %v888
        %894 = vmatprep.subr.mxu0 0.0
        %895 = vmatpush1.msra.mxu0 %v889
        %896 = vmatprep.subr.mxu0 0.0
        %897 = vmatpush1.msra.mxu0 %v890
        %898 = vmatprep.subr.mxu0 0.0
        %899 = vmatpush1.msra.mxu0 %v891
        %900 = vmatprep.subr.mxu0 0.0
        %901 = vmatpush1.msra.mxu0 0.0
        %902 = vmatprep.subr.mxu0 0.0
        %903 = vmatpush1.msra.mxu0 0.0
        %904 = vmatprep.subr.mxu0 0.0
        %905 = vmatpush1.msra.mxu0 0.0
        %906 = vmatprep.subr.mxu0 0.0
        %907 = vmatpush1.msra.mxu0 0.0
        %908 = vmatprep.subr.mxu0 0.0
        %909 = vmatpush1.msra.mxu0 0.0
        %910 = vmatprep.subr.mxu0 0.0
        %911 = vmatpush1.msra.mxu0 0.0
        %912 = vmatprep.subr.mxu0 0.0
        %913 = vmatpush1.msra.mxu0 0.0
        %914 = vmatprep.subr.mxu0 0.0
        %915 = vmatpush1.msra.mxu0 0.0
        %916 = vmatprep.subr.mxu0 0.0
        %917 = vmatpush1.msra.mxu0 0.0
        %918 = vmatprep.subr.mxu0 0.0
        %919 = vmatpush1.msra.mxu0 0.0
        %920 = vmatprep.subr.mxu0 0.0
        %921 = vmatpush1.msra.mxu0 0.0
        %922 = vmatprep.subr.mxu0 0.0
        %923 = vmatpush1.msra.mxu0 0.0
        %924 = vmatprep.subr.mxu0 0.0
        %925 = vmatpush1.msra.mxu0 0.0
        %926 = vmatprep.subr.mxu0 0.0
        %927 = vmatpush1.msra.mxu0 0.0
        %928 = vmatprep.subr.mxu0 0.0
        %929 = vmatpush1.msra.mxu0 0.0
        %930 = vmatprep.subr.mxu0 0.0
        %931 = vmatpush1.msra.mxu0 0.0
        %932 = vmatprep.subr.mxu0 0.0
        %933 = vmatpush1.msra.mxu0 0.0
        %934 = vmatprep.subr.mxu0 0.0
        %935 = vmatpush1.msra.mxu0 0.0
        %936 = vmatprep.subr.mxu0 0.0
        %937 = vmatpush1.msra.mxu0 0.0
        %938 = vmatprep.subr.mxu0 0.0
        %939 = vmatpush1.msra.mxu0 0.0
        %940 = vmatprep.subr.mxu0 0.0
        %941 = vmatpush1.msra.mxu0 0.0
        %942 = vmatprep.subr.mxu0 0.0
        %943 = vmatpush1.msra.mxu0 0.0
        %944 = vmatprep.subr.mxu0 0.0
        %945 = vmatpush1.msra.mxu0 0.0
        %946 = vmatprep.subr.mxu0 0.0
        %947 = vmatpush1.msra.mxu0 0.0
        %948 = vmatprep.subr.mxu0 0.0
        %949 = vmatpush1.msra.mxu0 0.0
        %950 = vmatprep.subr.mxu0 0.0
        %951 = vmatpush1.msra.mxu0 0.0
        %952 = vmatprep.subr.mxu0 0.0
        %953 = vmatpush1.msra.mxu0 0.0
        %954 = vmatprep.subr.mxu0 0.0
        %955 = vmatpush1.msra.mxu0 0.0
        %956 = vmatprep.mubr.f32.mxu0 0.0
        %957 = vmatmul.mubr.f32.gmra.mrb[0].mxu0 %v216
        %v958 = vpop.f32.mrb[0].mxu0
        %v959 = vadd.f32 0.0, %v958
        %v960 = vpop.f32.mrb[0].mxu0
        %961 = vmatprep.mubr.f32.mxu0 0.0
        %962 = vmatmul.mubr.f32.gmra.mrb[0].mxu0 %v219
        %v963 = vpop.f32.mrb[0].mxu0
        %v964 = vadd.f32 0.0, %v963
        %v965 = vpop.f32.mrb[0].mxu0
        %966 = vmatprep.mubr.f32.mxu0 0.0
        %967 = vmatmul.mubr.f32.gmra.mrb[0].mxu0 %v222
        %v968 = vpop.f32.mrb[0].mxu0
        %v969 = vadd.f32 0.0, %v968
        %v970 = vpop.f32.mrb[0].mxu0
        %971 = vmatprep.mubr.f32.mxu0 0.0
        %972 = vmatmul.mubr.f32.gmra.mrb[0].mxu0 %v225
        %v973 = vpop.f32.mrb[0].mxu0
        %v974 = vadd.f32 0.0, %v973
        %v975 = vpop.f32.mrb[0].mxu0
        %976 = vdwg.mxu0
        %s977 = scalar_lea.vmem %s203, 224 [#allocation3]
        %978 = vst.msk [vmem:[%s977] sm:$0xff] %vm312, %v959
        %979 = vst.msk [vmem:[%s977 + $0x8] sm:$0xff] %vm312, %v964
        %980 = vst.msk [vmem:[%s977 + $0x10] sm:$0xff] %vm312, %v969
        %981 = vst.msk [vmem:[%s977 + $0x18] sm:$0xff] %vm312, %v974
        %s982 = sand.u32 %s84, 1
        %s983 = sand.u32 %s84, 1
        %s984 = smul.addr %s983, 256
        %s985 = scalar_lea.vmem [#allocation3], %s984
        // Predicated region
        $region67: #{_lambda_.1} parent=61 // pred_check
          %p986 = pneg %p94
        $region68: #{_lambda_.1} parent=61 // pred_check_branch
          %988 = sbr.rel (%p986) target = $region70
        $region69: #{_lambda_.1} parent=61 // pred_region
          %s989 = smul.u32 4, %s18
          %s990 = smul.addr %s17, 64
          %s991 = sadd.s32 %s989, %s990
          %s992 = smul.addr %s991, 8
          %s993 = scalar_lea.vmem %s2, %s992
          // Predicated region
          $region71: #{_lambda_.1} parent=69 // pred_check
            _
          $region72: #{_lambda_.1} parent=69 // pred_check_branch
            %995 = sbr.rel (0) target = $region74
          $region73: #{_lambda_.1} parent=69 // pred_region
            // Predicated region
            $region75: #{_lambda_.1} parent=73 // pred_check
              _
            $region76: #{_lambda_.1} parent=73 // pred_check_branch
              %997 = sbr.rel (0) target = $region78
            $region77: #{_lambda_.1} parent=73 // pred_region
              // Predicated region
              $region90: #{_lambda_.1} parent=77 // pred_check
                _
              $region91: #{_lambda_.1} parent=77 // pred_check_branch
                %1074 = sbr.rel (0) target = $region93
              $region92: #{_lambda_.1} parent=77 // pred_region
                loop: start=0, step=1, limit=1
                $region94: #{_lambda_.1} parent=92 // loop_pre_header
                  _
                $region95: #{_lambda_.1} parent=92 // loop_header
                  %s1076 = sphi 0, %s1080
                  %p1077 = scmp.ge.s32.totalorder %s1076, 1
                  %s1081 = sphi %s985, %s985
                  %s1082 = sphi %s993, %s993
                $region96: #{_lambda_.1} parent=92 // loop_header_branch
                  %1079 = sbr.rel (%p1077) target = $region100
                $region97: #{_lambda_.1} parent=92 // loop_body
                  %v1083 = vld [vmem:[%s1081] sm:$0xff]
                  %1084 = vst [vmem:[%s1082] sm:$0xff] %v1083
                  %v1085 = vld [vmem:[%s1081 + $0x8] sm:$0xff]
                  %1086 = vst [vmem:[%s1082 + $0x8] sm:$0xff] %v1085
                  %v1087 = vld [vmem:[%s1081 + $0x10] sm:$0xff]
                  %1088 = vst [vmem:[%s1082 + $0x10] sm:$0xff] %v1087
                  %v1089 = vld [vmem:[%s1081 + $0x18] sm:$0xff]
                  %1090 = vst [vmem:[%s1082 + $0x18] sm:$0xff] %v1089
                  %v1091 = vld [vmem:[%s1081 + $0x20] sm:$0xff]
                  %1092 = vst [vmem:[%s1082 + $0x40] sm:$0xff] %v1091
                  %v1093 = vld [vmem:[%s1081 + $0x28] sm:$0xff]
                  %1094 = vst [vmem:[%s1082 + $0x48] sm:$0xff] %v1093
                  %v1095 = vld [vmem:[%s1081 + $0x30] sm:$0xff]
                  %1096 = vst [vmem:[%s1082 + $0x50] sm:$0xff] %v1095
                  %v1097 = vld [vmem:[%s1081 + $0x38] sm:$0xff]
                  %1098 = vst [vmem:[%s1082 + $0x58] sm:$0xff] %v1097
                  %v1099 = vld [vmem:[%s1081 + $0x40] sm:$0xff]
                  %1100 = vst [vmem:[%s1082 + $0x80] sm:$0xff] %v1099
                  %v1101 = vld [vmem:[%s1081 + $0x48] sm:$0xff]
                  %1102 = vst [vmem:[%s1082 + $0x88] sm:$0xff] %v1101
                  %v1103 = vld [vmem:[%s1081 + $0x50] sm:$0xff]
                  %1104 = vst [vmem:[%s1082 + $0x90] sm:$0xff] %v1103
                  %v1105 = vld [vmem:[%s1081 + $0x58] sm:$0xff]
                  %1106 = vst [vmem:[%s1082 + $0x98] sm:$0xff] %v1105
                  %v1107 = vld [vmem:[%s1081 + $0x60] sm:$0xff]
                  %1108 = vst [vmem:[%s1082 + $0xc0] sm:$0xff] %v1107
                  %v1109 = vld [vmem:[%s1081 + $0x68] sm:$0xff]
                  %1110 = vst [vmem:[%s1082 + $0xc8] sm:$0xff] %v1109
                  %v1111 = vld [vmem:[%s1081 + $0x70] sm:$0xff]
                  %1112 = vst [vmem:[%s1082 + $0xd0] sm:$0xff] %v1111
                  %v1113 = vld [vmem:[%s1081 + $0x78] sm:$0xff]
                  %1114 = vst [vmem:[%s1082 + $0xd8] sm:$0xff] %v1113
                  %v1115 = vld [vmem:[%s1081 + $0x80] sm:$0xff]
                  %1116 = vst [vmem:[%s1082 + $0x100] sm:$0xff] %v1115
                  %v1117 = vld [vmem:[%s1081 + $0x88] sm:$0xff]
                  %1118 = vst [vmem:[%s1082 + $0x108] sm:$0xff] %v1117
                  %v1119 = vld [vmem:[%s1081 + $0x90] sm:$0xff]
                  %1120 = vst [vmem:[%s1082 + $0x110] sm:$0xff] %v1119
                  %v1121 = vld [vmem:[%s1081 + $0x98] sm:$0xff]
                  %1122 = vst [vmem:[%s1082 + $0x118] sm:$0xff] %v1121
                  %v1123 = vld [vmem:[%s1081 + $0xa0] sm:$0xff]
                  %1124 = vst [vmem:[%s1082 + $0x140] sm:$0xff] %v1123
                  %v1125 = vld [vmem:[%s1081 + $0xa8] sm:$0xff]
                  %1126 = vst [vmem:[%s1082 + $0x148] sm:$0xff] %v1125
                  %v1127 = vld [vmem:[%s1081 + $0xb0] sm:$0xff]
                  %1128 = vst [vmem:[%s1082 + $0x150] sm:$0xff] %v1127
                  %v1129 = vld [vmem:[%s1081 + $0xb8] sm:$0xff]
                  %1130 = vst [vmem:[%s1082 + $0x158] sm:$0xff] %v1129
                  %v1131 = vld [vmem:[%s1081 + $0xc0] sm:$0xff]
                  %1132 = vst [vmem:[%s1082 + $0x180] sm:$0xff] %v1131
                  %v1133 = vld [vmem:[%s1081 + $0xc8] sm:$0xff]
                  %1134 = vst [vmem:[%s1082 + $0x188] sm:$0xff] %v1133
                  %v1135 = vld [vmem:[%s1081 + $0xd0] sm:$0xff]
                  %1136 = vst [vmem:[%s1082 + $0x190] sm:$0xff] %v1135
                  %v1137 = vld [vmem:[%s1081 + $0xd8] sm:$0xff]
                  %1138 = vst [vmem:[%s1082 + $0x198] sm:$0xff] %v1137
                  %v1139 = vld [vmem:[%s1081 + $0xe0] sm:$0xff]
                  %1140 = vst [vmem:[%s1082 + $0x1c0] sm:$0xff] %v1139
                  %v1141 = vld [vmem:[%s1081 + $0xe8] sm:$0xff]
                  %1142 = vst [vmem:[%s1082 + $0x1c8] sm:$0xff] %v1141
                  %v1143 = vld [vmem:[%s1081 + $0xf0] sm:$0xff]
                  %1144 = vst [vmem:[%s1082 + $0x1d0] sm:$0xff] %v1143
                  %v1145 = vld [vmem:[%s1081 + $0xf8] sm:$0xff]
                  %1146 = vst [vmem:[%s1082 + $0x1d8] sm:$0xff] %v1145
                $region98: #{_lambda_.1} parent=92 // loop_footer
                  %s1080 = sadd.s32 1, %s1076
                $region99: #{_lambda_.1} parent=92 // loop_footer_branch
                  %1075 = sbr.rel target = $region95
                $region100: #{_lambda_.1} parent=92 // loop_exit
                  _
              $region93: #{_lambda_.1} parent=77 // pred_fallthru
                _
              // Predicated region
              $region101: #{_lambda_.1} parent=77 // pred_check
                _
              $region102: #{_lambda_.1} parent=77 // pred_check_branch
                %1148 = sbr.rel target = $region104
              $region103: #{_lambda_.1} parent=77 // pred_region
                _
              $region104: #{_lambda_.1} parent=77 // pred_fallthru
                _
            $region78: #{_lambda_.1} parent=73 // pred_fallthru
              _
            // Predicated region
            $region79: #{_lambda_.1} parent=73 // pred_check
              _
            $region80: #{_lambda_.1} parent=73 // pred_check_branch
              %999 = sbr.rel target = $region82
            $region81: #{_lambda_.1} parent=73 // pred_region
              loop: start=0, step=1, limit=1
              $region83: #{_lambda_.1} parent=81 // loop_pre_header
                _
              $region84: #{_lambda_.1} parent=81 // loop_header
                %s1002 = sphi 0, %s1006
                %p1003 = scmp.ge.s32.totalorder %s1002, 1
                %s1007 = sphi %s985, %s985
                %s1008 = sphi %s993, %s993
              $region85: #{_lambda_.1} parent=81 // loop_header_branch
                %1005 = sbr.rel (%p1003) target = $region89
              $region86: #{_lambda_.1} parent=81 // loop_body
                %v1009 = vld [vmem:[%s1007] sm:$0xff]
                %1010 = vst [vmem:[%s1008] sm:$0xff] %v1009
                %v1011 = vld [vmem:[%s1007 + $0x8] sm:$0xff]
                %1012 = vst [vmem:[%s1008 + $0x8] sm:$0xff] %v1011
                %v1013 = vld [vmem:[%s1007 + $0x10] sm:$0xff]
                %1014 = vst [vmem:[%s1008 + $0x10] sm:$0xff] %v1013
                %v1015 = vld [vmem:[%s1007 + $0x18] sm:$0xff]
                %1016 = vst [vmem:[%s1008 + $0x18] sm:$0xff] %v1015
                %v1017 = vld [vmem:[%s1007 + $0x20] sm:$0xff]
                %1018 = vst [vmem:[%s1008 + $0x40] sm:$0xff] %v1017
                %v1019 = vld [vmem:[%s1007 + $0x28] sm:$0xff]
                %1020 = vst [vmem:[%s1008 + $0x48] sm:$0xff] %v1019
                %v1021 = vld [vmem:[%s1007 + $0x30] sm:$0xff]
                %1022 = vst [vmem:[%s1008 + $0x50] sm:$0xff] %v1021
                %v1023 = vld [vmem:[%s1007 + $0x38] sm:$0xff]
                %1024 = vst [vmem:[%s1008 + $0x58] sm:$0xff] %v1023
                %v1025 = vld [vmem:[%s1007 + $0x40] sm:$0xff]
                %1026 = vst [vmem:[%s1008 + $0x80] sm:$0xff] %v1025
                %v1027 = vld [vmem:[%s1007 + $0x48] sm:$0xff]
                %1028 = vst [vmem:[%s1008 + $0x88] sm:$0xff] %v1027
                %v1029 = vld [vmem:[%s1007 + $0x50] sm:$0xff]
                %1030 = vst [vmem:[%s1008 + $0x90] sm:$0xff] %v1029
                %v1031 = vld [vmem:[%s1007 + $0x58] sm:$0xff]
                %1032 = vst [vmem:[%s1008 + $0x98] sm:$0xff] %v1031
                %v1033 = vld [vmem:[%s1007 + $0x60] sm:$0xff]
                %1034 = vst [vmem:[%s1008 + $0xc0] sm:$0xff] %v1033
                %v1035 = vld [vmem:[%s1007 + $0x68] sm:$0xff]
                %1036 = vst [vmem:[%s1008 + $0xc8] sm:$0xff] %v1035
                %v1037 = vld [vmem:[%s1007 + $0x70] sm:$0xff]
                %1038 = vst [vmem:[%s1008 + $0xd0] sm:$0xff] %v1037
                %v1039 = vld [vmem:[%s1007 + $0x78] sm:$0xff]
                %1040 = vst [vmem:[%s1008 + $0xd8] sm:$0xff] %v1039
                %v1041 = vld [vmem:[%s1007 + $0x80] sm:$0xff]
                %1042 = vst [vmem:[%s1008 + $0x100] sm:$0xff] %v1041
                %v1043 = vld [vmem:[%s1007 + $0x88] sm:$0xff]
                %1044 = vst [vmem:[%s1008 + $0x108] sm:$0xff] %v1043
                %v1045 = vld [vmem:[%s1007 + $0x90] sm:$0xff]
                %1046 = vst [vmem:[%s1008 + $0x110] sm:$0xff] %v1045
                %v1047 = vld [vmem:[%s1007 + $0x98] sm:$0xff]
                %1048 = vst [vmem:[%s1008 + $0x118] sm:$0xff] %v1047
                %v1049 = vld [vmem:[%s1007 + $0xa0] sm:$0xff]
                %1050 = vst [vmem:[%s1008 + $0x140] sm:$0xff] %v1049
                %v1051 = vld [vmem:[%s1007 + $0xa8] sm:$0xff]
                %1052 = vst [vmem:[%s1008 + $0x148] sm:$0xff] %v1051
                %v1053 = vld [vmem:[%s1007 + $0xb0] sm:$0xff]
                %1054 = vst [vmem:[%s1008 + $0x150] sm:$0xff] %v1053
                %v1055 = vld [vmem:[%s1007 + $0xb8] sm:$0xff]
                %1056 = vst [vmem:[%s1008 + $0x158] sm:$0xff] %v1055
                %v1057 = vld [vmem:[%s1007 + $0xc0] sm:$0xff]
                %1058 = vst [vmem:[%s1008 + $0x180] sm:$0xff] %v1057
                %v1059 = vld [vmem:[%s1007 + $0xc8] sm:$0xff]
                %1060 = vst [vmem:[%s1008 + $0x188] sm:$0xff] %v1059
                %v1061 = vld [vmem:[%s1007 + $0xd0] sm:$0xff]
                %1062 = vst [vmem:[%s1008 + $0x190] sm:$0xff] %v1061
                %v1063 = vld [vmem:[%s1007 + $0xd8] sm:$0xff]
                %1064 = vst [vmem:[%s1008 + $0x198] sm:$0xff] %v1063
                %v1065 = vld [vmem:[%s1007 + $0xe0] sm:$0xff]
                %1066 = vst [vmem:[%s1008 + $0x1c0] sm:$0xff] %v1065
                %v1067 = vld [vmem:[%s1007 + $0xe8] sm:$0xff]
                %1068 = vst [vmem:[%s1008 + $0x1c8] sm:$0xff] %v1067
                %v1069 = vld [vmem:[%s1007 + $0xf0] sm:$0xff]
                %1070 = vst [vmem:[%s1008 + $0x1d0] sm:$0xff] %v1069
                %v1071 = vld [vmem:[%s1007 + $0xf8] sm:$0xff]
                %1072 = vst [vmem:[%s1008 + $0x1d8] sm:$0xff] %v1071
              $region87: #{_lambda_.1} parent=81 // loop_footer
                %s1006 = sadd.s32 1, %s1002
              $region88: #{_lambda_.1} parent=81 // loop_footer_branch
                %1001 = sbr.rel target = $region84
              $region89: #{_lambda_.1} parent=81 // loop_exit
                _
            $region82: #{_lambda_.1} parent=73 // pred_fallthru
              _
          $region74: #{_lambda_.1} parent=69 // pred_fallthru
            _
          %1149 = vnop
        $region70: #{_lambda_.1} parent=61 // pred_fallthru
          _
      $region62: #{_lambda_.1} parent=5 // pred_fallthru
        _
      %p1150 = scmp.le.s32.totalorder 2, %s8
      // Predicated region
      $region105: #{_lambda_.1} parent=5 // pred_check
        %p1151 = pneg %p1150
      $region106: #{_lambda_.1} parent=5 // pred_check_branch
        %1153 = sbr.rel (%p1151) target = $region108
      $region107: #{_lambda_.1} parent=5 // pred_region
        %s1154 = ssub.s32 %s8, 2
        // Predicated region
        $region109: #{_lambda_.1} parent=107 // pred_check
          %p1155 = pneg %p100
        $region110: #{_lambda_.1} parent=107 // pred_check_branch
          %1157 = sbr.rel (%p1155) target = $region112
        $region111: #{_lambda_.1} parent=107 // pred_region
          %s1158 = sand.u32 %s85, 1
          %s1159 = sand.u32 %s85, 1
          %s1160 = smul.addr %s1159, 256
          %s1161 = scalar_lea.vmem [#allocation3], %s1160
        $region112: #{_lambda_.1} parent=107 // pred_fallthru
          _
      $region108: #{_lambda_.1} parent=5 // pred_fallthru
        _
    $region6: #{_lambda_.1} parent=1 // loop_footer
      %s12 = sadd.s32 1, %s8
    $region7: #{_lambda_.1} parent=1 // loop_footer_branch
      %7 = sbr.rel target = $region3
    $region8: #{_lambda_.1} parent=1 // loop_exit
      _

</llo_original>
